<compile_context>
chip_gen: v5e
topology: v5e:2x2
jax: 0.10.0
libtpu: 0.0.40
codegen_flags: <defaults>
</compile_context>

<pallas_src>
import math

import jax
import jax.numpy as jnp
import numpy as np
from jax.experimental import pallas as pl
from jax.experimental.pallas import tpu as pltpu

# ----- small config consistent with the module (hidden = heads * head_dim) -----
B = 2              # batch
S = 16             # seq_len
H = 128            # hidden_size
NH = 8             # num_attention_heads
NKV = 4            # num_key_value_heads
D = H // NH        # head_dim = 16
KVH = NKV * D      # 64
N_REP = NH // NKV  # 2
N = B * S          # 32  (batch folded into sublane rows)
QK = H + KVH       # 192 (lanes that get RoPE'd)
ROPE_THETA = 10000.0
NEG_INF = -1e30


# ----------------------------- Pallas kernel ---------------------------------
def attention_kernel(x_ref, wqkv_ref, wo_ref, cos_ref, sin_ref, mask_ref, ones_ref,
                     o_ref, kbd_ref, vbd_ref):
    x = x_ref[...]                                   # (N, H) bf16, batch folded into rows

    # Fused QKV (+ pre-rotated q/k) projection: one MXU pass, f32 accumulate.
    # Column layout: [ q_raw(H) | k_raw(KVH) | q_rot(H) | k_rot(KVH) | v(KVH) ]
    xqkv = jnp.dot(x, wqkv_ref[...], preferred_element_type=jnp.float32)  # (N, 2*QK+KVH)

    # RoPE: rope(t) = t*cos + (t@P)*sin; t@P already folded into the weights,
    # so the combine is one lane-dense f32 FMA over the 192 [q|k] lanes.
    qk = xqkv[:, :QK] * cos_ref[...] + xqkv[:, QK:2 * QK] * sin_ref[...]
    xq = qk[:, :H].astype(jnp.bfloat16)              # (N, H)   (1/sqrt(D) folded in)
    xk = qk[:, H:].astype(jnp.bfloat16)              # (N, KVH)
    xv = xqkv[:, 2 * QK:].astype(jnp.bfloat16)       # (N, KVH)

    # Head-batched block-diagonal K / V operands (GQA repeat = kv source slice).
    # Off-diagonal blocks must be zero -> clear every call (scratch persists).
    kbd_ref[...] = jnp.zeros_like(kbd_ref)
    vbd_ref[...] = jnp.zeros_like(vbd_ref)
    for h in range(NH):                              # static unroll, static slice stores
        kv = h // N_REP
        kbd_ref[h * N:(h + 1) * N, h * D:(h + 1) * D] = xk[:, kv * D:(kv + 1) * D]
        vbd_ref[h * N:(h + 1) * N, h * D:(h + 1) * D] = xv[:, kv * D:(kv + 1) * D]

    # All heads' scores in one MXU pass: (N,H) . (NH*N,H)^T -> (N, NH*N) = (32, 256).
    s = jax.lax.dot_general(
        xq, kbd_ref[...], dimension_numbers=(((1,), (1,)), ((), ())),
        preferred_element_type=jnp.float32)
    s = s + mask_ref[...]                            # per-head-tiled block-causal mask, f32
    # Global row max is a constant shift within every head segment, so each
    # segment's softmax is unchanged while exp stays overflow-safe.
    s = s - jnp.max(s, axis=-1, keepdims=True)
    p = jnp.exp(s).astype(jnp.bfloat16)              # masked columns are exactly 0

    # Head-batched P@V and per-head softmax denominators, one MXU pass each.
    # ones_ref shares V_bd's block-diagonal layout, so the denominators land
    # lane-aligned with their head's output slice.
    numer = jnp.dot(p, vbd_ref[...], preferred_element_type=jnp.float32)   # (N, H)
    denom = jnp.dot(p, ones_ref[...], preferred_element_type=jnp.float32)  # (N, H)
    attn = numer * pl.reciprocal(denom, approx=True)

    # Dense output projection, single lane-dense bf16 store.
    o_ref[...] = jnp.dot(attn.astype(jnp.bfloat16), wo_ref[...],
                         preferred_element_type=jnp.float32).astype(jnp.bfloat16)


def attention_forward(x, wqkv, wo, cos_qk, sin_qk, mask_t, ones_seg):
    Bb, Ss, Hh = x.shape
    n = Bb * Ss
    x_flat = x.reshape(n, Hh)
    full = lambda a: pl.BlockSpec(a.shape, lambda i: (0,) * a.ndim)
    out = pl.pallas_call(
        attention_kernel,
        out_shape=jax.ShapeDtypeStruct((n, Hh), jnp.bfloat16),
        grid=(1,),                                   # single step: batch folded into rows
        in_specs=[full(x_flat), full(wqkv), full(wo),
                  full(cos_qk), full(sin_qk), full(mask_t), full(ones_seg)],
        out_specs=pl.BlockSpec((n, Hh), lambda i: (0, 0)),
        scratch_shapes=[pltpu.VMEM((NH * n, Hh), jnp.bfloat16),    # block-diag K
                        pltpu.VMEM((NH * n, Hh), jnp.bfloat16)],   # block-diag V
        compiler_params=pltpu.CompilerParams(dimension_semantics=("arbitrary",)),
    )(x_flat, wqkv, wo, cos_qk, sin_qk, mask_t, ones_seg)
    return out.reshape(Bb, Ss, Hh)


# ------------------------- pure-JAX reference (torch semantics) ---------------
def reference_forward(x, wq, wk, wv, wo, cos, sin, mask):
    Bb, Ss, Hh = x.shape
    xq = (x @ wq).reshape(Bb, Ss, NH, D)
    xk = (x @ wk).reshape(Bb, Ss, NKV, D)
    xv = (x @ wv).reshape(Bb, Ss, NKV, D)

    def rope(t, nh):
        tr = t.reshape(Bb, Ss, nh, D // 2, 2)
        re, im = tr[..., 0], tr[..., 1]
        c = cos[None, :, None, :]
        s_ = sin[None, :, None, :]
        out_re = re * c - im * s_
        out_im = re * s_ + im * c
        return jnp.stack([out_re, out_im], axis=-1).reshape(Bb, Ss, nh, D)

    xq = rope(xq, NH)
    xk = rope(xk, NKV)
    xk = jnp.repeat(xk, N_REP, axis=2)   # matches torch expand+reshape ordering
    xv = jnp.repeat(xv, N_REP, axis=2)

    xq = xq.transpose(0, 2, 1, 3)        # (B, NH, S, D)
    xk = xk.transpose(0, 2, 1, 3)
    xv = xv.transpose(0, 2, 1, 3)

    scores = jnp.einsum("bhqd,bhkd->bhqk", xq, xk) / math.sqrt(D) + mask[None, None]
    attn = jax.nn.softmax(scores.astype(jnp.float32), axis=-1)
    out = jnp.einsum("bhqk,bhkd->bhqd", attn, xv)
    out = out.transpose(0, 2, 1, 3).reshape(Bb, Ss, Hh)
    return out @ wo


# ----------------------------------- main -------------------------------------
if __name__ == "__main__":
    key = jax.random.PRNGKey(0)
    kx, kq, kk, kv, ko = jax.random.split(key, 5)

    x = jax.random.normal(kx, (B, S, H), dtype=jnp.float32)

    # nn.Linear weights, stored transposed as (in_features, out_features)
    wq = 0.02 * jax.random.normal(kq, (H, NH * D), dtype=jnp.float32)
    wk = 0.02 * jax.random.normal(kk, (H, KVH), dtype=jnp.float32)
    wv = 0.02 * jax.random.normal(kv, (H, KVH), dtype=jnp.float32)
    wo = 0.02 * jax.random.normal(ko, (NH * D, H), dtype=jnp.float32)

    # rotary tables (freqs_cis equivalent): cos/sin of shape (S, D//2)
    inv_freq = 1.0 / (ROPE_THETA ** (jnp.arange(0, D, 2, dtype=jnp.float32) / D))
    angles = jnp.arange(S, dtype=jnp.float32)[:, None] * inv_freq[None, :]
    cos = jnp.cos(angles)                       # (S, D//2)
    sin = jnp.sin(angles)                       # (S, D//2)
    cos_full = jnp.repeat(cos, 2, axis=-1)      # (S, D), interleaved expansion
    sin_full = jnp.repeat(sin, 2, axis=-1)      # (S, D)

    # fused lane-dense cos/sin covering [xq | xk] (192 lanes), batch-tiled to N rows
    cos_qk = jnp.tile(jnp.concatenate([jnp.tile(cos_full, (1, NH)),
                                       jnp.tile(cos_full, (1, NKV))], axis=1), (B, 1))
    sin_qk = jnp.tile(jnp.concatenate([jnp.tile(sin_full, (1, NH)),
                                       jnp.tile(sin_full, (1, NKV))], axis=1), (B, 1))

    # signed pair-swap matrix: (t @ P)[2i] = -t[2i+1], (t @ P)[2i+1] = t[2i]
    P = np.zeros((D, D), dtype=np.float32)
    for i in range(D // 2):
        P[2 * i + 1, 2 * i] = -1.0
        P[2 * i, 2 * i + 1] = 1.0
    Pq = np.kron(np.eye(NH, dtype=np.float32), P)    # (H, H)
    Pk = np.kron(np.eye(NKV, dtype=np.float32), P)   # (KVH, KVH)

    # fused weight with 1/sqrt(D) and the RoPE rotation folded in (both exact:
    # scalar scale, signed permutation).  Columns: [ q_raw | k_raw | q_rot | k_rot | v ]
    scale = 1.0 / math.sqrt(D)
    wq_s = np.asarray(wq) * scale
    wqkv = jnp.asarray(np.concatenate(
        [wq_s, np.asarray(wk), wq_s @ Pq, np.asarray(wk) @ Pk, np.asarray(wv)],
        axis=1)).astype(jnp.bfloat16)               # (H, 2*(H+KVH)+KVH) = (128, 448)
    wo_b = wo.astype(jnp.bfloat16)

    # block-causal additive mask for the batch-folded layout, tiled per head:
    # (N, N) block-diagonal causal (cross-batch = -inf) -> (N, NH*N)
    causal = np.where(np.tril(np.ones((S, S), dtype=bool)), 0.0, NEG_INF).astype(np.float32)
    mask_nn = np.full((N, N), NEG_INF, dtype=np.float32)
    for b in range(B):
        mask_nn[b * S:(b + 1) * S, b * S:(b + 1) * S] = causal
    mask_t = jnp.asarray(np.tile(mask_nn, (1, NH)))  # (32, 256) f32

    # block-diagonal ones (same layout as V_bd) -> per-head softmax denominators
    ones_np = np.zeros((NH * N, H), dtype=np.float32)
    for h in range(NH):
        ones_np[h * N:(h + 1) * N, h * D:(h + 1) * D] = 1.0
    ones_seg = jnp.asarray(ones_np).astype(jnp.bfloat16)

    x_b = x.astype(jnp.bfloat16)

    out = attention_forward(x_b, wqkv, wo_b, cos_qk, sin_qk, mask_t, ones_seg)
    out = jax.block_until_ready(out)

    ref = reference_forward(x, wq, wk, wv, wo, cos, sin, jnp.asarray(causal))
    # bf16 MXU operands, bf16 attn weights, approx reciprocal, bf16 output
    # -> deliberately relaxed tolerance
    np.testing.assert_allclose(np.asarray(out.astype(jnp.float32)), np.asarray(ref),
                               rtol=2e-2, atol=2e-2)

    print("KERNEL_OK")
</pallas_src>

<mosaic_0001>
module attributes {stable_mosaic.version = 11 : i64} {
  func.func @attention_kernel(%arg0: i32, %arg1: memref<32x128xbf16, #tpu.memory_space<vmem>>, %arg2: memref<128x448xbf16, #tpu.memory_space<vmem>>, %arg3: memref<128x128xbf16, #tpu.memory_space<vmem>>, %arg4: memref<32x192xf32, #tpu.memory_space<vmem>>, %arg5: memref<32x192xf32, #tpu.memory_space<vmem>>, %arg6: memref<32x256xf32, #tpu.memory_space<vmem>>, %arg7: memref<256x128xbf16, #tpu.memory_space<vmem>>, %arg8: memref<32x128xbf16, #tpu.memory_space<vmem>>, %arg9: memref<256x128xbf16, #tpu.memory_space<vmem>>, %arg10: memref<256x128xbf16, #tpu.memory_space<vmem>>) attributes {dimension_semantics = [#tpu.dimension_semantics<arbitrary>], iteration_bounds = array<i64: 1>, scalar_prefetch = 0 : i64, scratch_operands = 2 : i64, tpu.core_type = #tpu.core_type<tc>, window_params = [{pipeline_mode = #tpu.pipeline_mode<synchronous>, transform_indices = @transform_0, window_bounds = array<i64: 32, 128>}, {pipeline_mode = #tpu.pipeline_mode<synchronous>, transform_indices = @transform_1, window_bounds = array<i64: 128, 448>}, {pipeline_mode = #tpu.pipeline_mode<synchronous>, transform_indices = @transform_2, window_bounds = array<i64: 128, 128>}, {pipeline_mode = #tpu.pipeline_mode<synchronous>, transform_indices = @transform_3, window_bounds = array<i64: 32, 192>}, {pipeline_mode = #tpu.pipeline_mode<synchronous>, transform_indices = @transform_4, window_bounds = array<i64: 32, 192>}, {pipeline_mode = #tpu.pipeline_mode<synchronous>, transform_indices = @transform_5, window_bounds = array<i64: 32, 256>}, {pipeline_mode = #tpu.pipeline_mode<synchronous>, transform_indices = @transform_6, window_bounds = array<i64: 256, 128>}, {pipeline_mode = #tpu.pipeline_mode<synchronous>, transform_indices = @transform_7, window_bounds = array<i64: 32, 128>}]} {
    %c0 = arith.constant 0 : index
    %c0_0 = arith.constant 0 : index
    %0 = vector.load %arg1[%c0, %c0_0] : memref<32x128xbf16, #tpu.memory_space<vmem>>, vector<32x128xbf16>
    %c0_1 = arith.constant 0 : index
    %c0_2 = arith.constant 0 : index
    %1 = vector.load %arg2[%c0_1, %c0_2] : memref<128x448xbf16, #tpu.memory_space<vmem>>, vector<128x448xbf16>
    %cst = arith.constant dense<0.000000e+00> : vector<32x448xf32>
    %2 = tpu.matmul %0, %1, %cst {dimension_numbers = #tpu.dot_dimension_numbers<[1], [0], [0], [1], [0, 0, 1, 1], [], []>} : vector<32x128xbf16>, vector<128x448xbf16>, vector<32x448xf32> -> vector<32x448xf32>
    %3 = vector.extract_strided_slice %2 {offsets = [0, 0], sizes = [32, 192], strides = [1, 1]} : vector<32x448xf32> to vector<32x192xf32>
    %c0_3 = arith.constant 0 : index
    %c0_4 = arith.constant 0 : index
    %4 = vector.load %arg4[%c0_3, %c0_4] : memref<32x192xf32, #tpu.memory_space<vmem>>, vector<32x192xf32>
    %5 = arith.mulf %3, %4 : vector<32x192xf32>
    %6 = vector.extract_strided_slice %2 {offsets = [0, 192], sizes = [32, 192], strides = [1, 1]} : vector<32x448xf32> to vector<32x192xf32>
    %c0_5 = arith.constant 0 : index
    %c0_6 = arith.constant 0 : index
    %7 = vector.load %arg5[%c0_5, %c0_6] : memref<32x192xf32, #tpu.memory_space<vmem>>, vector<32x192xf32>
    %8 = arith.mulf %6, %7 : vector<32x192xf32>
    %9 = arith.addf %5, %8 : vector<32x192xf32>
    %10 = vector.extract_strided_slice %9 {offsets = [0, 0], sizes = [32, 128], strides = [1, 1]} : vector<32x192xf32> to vector<32x128xf32>
    %11 = arith.truncf %10 : vector<32x128xf32> to vector<32x128xbf16>
    %12 = vector.extract_strided_slice %9 {offsets = [0, 128], sizes = [32, 64], strides = [1, 1]} : vector<32x192xf32> to vector<32x64xf32>
    %13 = arith.truncf %12 : vector<32x64xf32> to vector<32x64xbf16>
    %14 = vector.extract_strided_slice %2 {offsets = [0, 384], sizes = [32, 64], strides = [1, 1]} : vector<32x448xf32> to vector<32x64xf32>
    %15 = arith.truncf %14 : vector<32x64xf32> to vector<32x64xbf16>
    %cst_7 = arith.constant 0.000000e+00 : bf16
    %16 = vector.broadcast %cst_7 : bf16 to vector<256x128xbf16>
    %c0_8 = arith.constant 0 : index
    %c0_9 = arith.constant 0 : index
    %17 = vector.load %arg9[%c0_8, %c0_9] : memref<256x128xbf16, #tpu.memory_space<vmem>>, vector<256x128xbf16>
    tpu.vector_store %arg9[%c0_8, %c0_9], %16 {strides = array<i32>} : memref<256x128xbf16, #tpu.memory_space<vmem>>, vector<256x128xbf16>,
    %cst_10 = arith.constant 0.000000e+00 : bf16
    %18 = vector.broadcast %cst_10 : bf16 to vector<256x128xbf16>
    %c0_11 = arith.constant 0 : index
    %c0_12 = arith.constant 0 : index
    %19 = vector.load %arg10[%c0_11, %c0_12] : memref<256x128xbf16, #tpu.memory_space<vmem>>, vector<256x128xbf16>
    tpu.vector_store %arg10[%c0_11, %c0_12], %18 {strides = array<i32>} : memref<256x128xbf16, #tpu.memory_space<vmem>>, vector<256x128xbf16>,
    %20 = vector.extract_strided_slice %13 {offsets = [0, 0], sizes = [32, 16], strides = [1, 1]} : vector<32x64xbf16> to vector<32x16xbf16>
    %c0_13 = arith.constant 0 : index
    %c0_14 = arith.constant 0 : index
    %21 = vector.load %arg9[%c0_13, %c0_14] : memref<256x128xbf16, #tpu.memory_space<vmem>>, vector<32x16xbf16>
    tpu.vector_store %arg9[%c0_13, %c0_14], %20 {strides = array<i32>} : memref<256x128xbf16, #tpu.memory_space<vmem>>, vector<32x16xbf16>,
    %22 = vector.extract_strided_slice %15 {offsets = [0, 0], sizes = [32, 16], strides = [1, 1]} : vector<32x64xbf16> to vector<32x16xbf16>
    %c0_15 = arith.constant 0 : index
    %c0_16 = arith.constant 0 : index
    %23 = vector.load %arg10[%c0_15, %c0_16] : memref<256x128xbf16, #tpu.memory_space<vmem>>, vector<32x16xbf16>
    tpu.vector_store %arg10[%c0_15, %c0_16], %22 {strides = array<i32>} : memref<256x128xbf16, #tpu.memory_space<vmem>>, vector<32x16xbf16>,
    %24 = vector.extract_strided_slice %13 {offsets = [0, 0], sizes = [32, 16], strides = [1, 1]} : vector<32x64xbf16> to vector<32x16xbf16>
    %c32 = arith.constant 32 : index
    %c16 = arith.constant 16 : index
    %25 = vector.load %arg9[%c32, %c16] : memref<256x128xbf16, #tpu.memory_space<vmem>>, vector<32x16xbf16>
    tpu.vector_store %arg9[%c32, %c16], %24 {strides = array<i32>} : memref<256x128xbf16, #tpu.memory_space<vmem>>, vector<32x16xbf16>,
    %26 = vector.extract_strided_slice %15 {offsets = [0, 0], sizes = [32, 16], strides = [1, 1]} : vector<32x64xbf16> to vector<32x16xbf16>
    %c32_17 = arith.constant 32 : index
    %c16_18 = arith.constant 16 : index
    %27 = vector.load %arg10[%c32_17, %c16_18] : memref<256x128xbf16, #tpu.memory_space<vmem>>, vector<32x16xbf16>
    tpu.vector_store %arg10[%c32_17, %c16_18], %26 {strides = array<i32>} : memref<256x128xbf16, #tpu.memory_space<vmem>>, vector<32x16xbf16>,
    %28 = vector.extract_strided_slice %13 {offsets = [0, 16], sizes = [32, 16], strides = [1, 1]} : vector<32x64xbf16> to vector<32x16xbf16>
    %c64 = arith.constant 64 : index
    %c32_19 = arith.constant 32 : index
    %29 = vector.load %arg9[%c64, %c32_19] : memref<256x128xbf16, #tpu.memory_space<vmem>>, vector<32x16xbf16>
    tpu.vector_store %arg9[%c64, %c32_19], %28 {strides = array<i32>} : memref<256x128xbf16, #tpu.memory_space<vmem>>, vector<32x16xbf16>,
    %30 = vector.extract_strided_slice %15 {offsets = [0, 16], sizes = [32, 16], strides = [1, 1]} : vector<32x64xbf16> to vector<32x16xbf16>
    %c64_20 = arith.constant 64 : index
    %c32_21 = arith.constant 32 : index
    %31 = vector.load %arg10[%c64_20, %c32_21] : memref<256x128xbf16, #tpu.memory_space<vmem>>, vector<32x16xbf16>
    tpu.vector_store %arg10[%c64_20, %c32_21], %30 {strides = array<i32>} : memref<256x128xbf16, #tpu.memory_space<vmem>>, vector<32x16xbf16>,
    %32 = vector.extract_strided_slice %13 {offsets = [0, 16], sizes = [32, 16], strides = [1, 1]} : vector<32x64xbf16> to vector<32x16xbf16>
    %c96 = arith.constant 96 : index
    %c48 = arith.constant 48 : index
    %33 = vector.load %arg9[%c96, %c48] : memref<256x128xbf16, #tpu.memory_space<vmem>>, vector<32x16xbf16>
    tpu.vector_store %arg9[%c96, %c48], %32 {strides = array<i32>} : memref<256x128xbf16, #tpu.memory_space<vmem>>, vector<32x16xbf16>,
    %34 = vector.extract_strided_slice %15 {offsets = [0, 16], sizes = [32, 16], strides = [1, 1]} : vector<32x64xbf16> to vector<32x16xbf16>
    %c96_22 = arith.constant 96 : index
    %c48_23 = arith.constant 48 : index
    %35 = vector.load %arg10[%c96_22, %c48_23] : memref<256x128xbf16, #tpu.memory_space<vmem>>, vector<32x16xbf16>
    tpu.vector_store %arg10[%c96_22, %c48_23], %34 {strides = array<i32>} : memref<256x128xbf16, #tpu.memory_space<vmem>>, vector<32x16xbf16>,
    %36 = vector.extract_strided_slice %13 {offsets = [0, 32], sizes = [32, 16], strides = [1, 1]} : vector<32x64xbf16> to vector<32x16xbf16>
    %c128 = arith.constant 128 : index
    %c64_24 = arith.constant 64 : index
    %37 = vector.load %arg9[%c128, %c64_24] : memref<256x128xbf16, #tpu.memory_space<vmem>>, vector<32x16xbf16>
    tpu.vector_store %arg9[%c128, %c64_24], %36 {strides = array<i32>} : memref<256x128xbf16, #tpu.memory_space<vmem>>, vector<32x16xbf16>,
    %38 = vector.extract_strided_slice %15 {offsets = [0, 32], sizes = [32, 16], strides = [1, 1]} : vector<32x64xbf16> to vector<32x16xbf16>
    %c128_25 = arith.constant 128 : index
    %c64_26 = arith.constant 64 : index
    %39 = vector.load %arg10[%c128_25, %c64_26] : memref<256x128xbf16, #tpu.memory_space<vmem>>, vector<32x16xbf16>
    tpu.vector_store %arg10[%c128_25, %c64_26], %38 {strides = array<i32>} : memref<256x128xbf16, #tpu.memory_space<vmem>>, vector<32x16xbf16>,
    %40 = vector.extract_strided_slice %13 {offsets = [0, 32], sizes = [32, 16], strides = [1, 1]} : vector<32x64xbf16> to vector<32x16xbf16>
    %c160 = arith.constant 160 : index
    %c80 = arith.constant 80 : index
    %41 = vector.load %arg9[%c160, %c80] : memref<256x128xbf16, #tpu.memory_space<vmem>>, vector<32x16xbf16>
    tpu.vector_store %arg9[%c160, %c80], %40 {strides = array<i32>} : memref<256x128xbf16, #tpu.memory_space<vmem>>, vector<32x16xbf16>,
    %42 = vector.extract_strided_slice %15 {offsets = [0, 32], sizes = [32, 16], strides = [1, 1]} : vector<32x64xbf16> to vector<32x16xbf16>
    %c160_27 = arith.constant 160 : index
    %c80_28 = arith.constant 80 : index
    %43 = vector.load %arg10[%c160_27, %c80_28] : memref<256x128xbf16, #tpu.memory_space<vmem>>, vector<32x16xbf16>
    tpu.vector_store %arg10[%c160_27, %c80_28], %42 {strides = array<i32>} : memref<256x128xbf16, #tpu.memory_space<vmem>>, vector<32x16xbf16>,
    %44 = vector.extract_strided_slice %13 {offsets = [0, 48], sizes = [32, 16], strides = [1, 1]} : vector<32x64xbf16> to vector<32x16xbf16>
    %c192 = arith.constant 192 : index
    %c96_29 = arith.constant 96 : index
    %45 = vector.load %arg9[%c192, %c96_29] : memref<256x128xbf16, #tpu.memory_space<vmem>>, vector<32x16xbf16>
    tpu.vector_store %arg9[%c192, %c96_29], %44 {strides = array<i32>} : memref<256x128xbf16, #tpu.memory_space<vmem>>, vector<32x16xbf16>,
    %46 = vector.extract_strided_slice %15 {offsets = [0, 48], sizes = [32, 16], strides = [1, 1]} : vector<32x64xbf16> to vector<32x16xbf16>
    %c192_30 = arith.constant 192 : index
    %c96_31 = arith.constant 96 : index
    %47 = vector.load %arg10[%c192_30, %c96_31] : memref<256x128xbf16, #tpu.memory_space<vmem>>, vector<32x16xbf16>
    tpu.vector_store %arg10[%c192_30, %c96_31], %46 {strides = array<i32>} : memref<256x128xbf16, #tpu.memory_space<vmem>>, vector<32x16xbf16>,
    %48 = vector.extract_strided_slice %13 {offsets = [0, 48], sizes = [32, 16], strides = [1, 1]} : vector<32x64xbf16> to vector<32x16xbf16>
    %c224 = arith.constant 224 : index
    %c112 = arith.constant 112 : index
    %49 = vector.load %arg9[%c224, %c112] : memref<256x128xbf16, #tpu.memory_space<vmem>>, vector<32x16xbf16>
    tpu.vector_store %arg9[%c224, %c112], %48 {strides = array<i32>} : memref<256x128xbf16, #tpu.memory_space<vmem>>, vector<32x16xbf16>,
    %50 = vector.extract_strided_slice %15 {offsets = [0, 48], sizes = [32, 16], strides = [1, 1]} : vector<32x64xbf16> to vector<32x16xbf16>
    %c224_32 = arith.constant 224 : index
    %c112_33 = arith.constant 112 : index
    %51 = vector.load %arg10[%c224_32, %c112_33] : memref<256x128xbf16, #tpu.memory_space<vmem>>, vector<32x16xbf16>
    tpu.vector_store %arg10[%c224_32, %c112_33], %50 {strides = array<i32>} : memref<256x128xbf16, #tpu.memory_space<vmem>>, vector<32x16xbf16>,
    %c0_34 = arith.constant 0 : index
    %c0_35 = arith.constant 0 : index
    %52 = vector.load %arg9[%c0_34, %c0_35] : memref<256x128xbf16, #tpu.memory_space<vmem>>, vector<256x128xbf16>
    %cst_36 = arith.constant dense<0.000000e+00> : vector<32x256xf32>
    %53 = tpu.matmul %11, %52, %cst_36 {dimension_numbers = #tpu.dot_dimension_numbers<[1], [1], [0], [0], [0, 0, 1, 0], [], []>} : vector<32x128xbf16>, vector<256x128xbf16>, vector<32x256xf32> -> vector<32x256xf32>
    %c0_37 = arith.constant 0 : index
    %c0_38 = arith.constant 0 : index
    %54 = vector.load %arg6[%c0_37, %c0_38] : memref<32x256xf32, #tpu.memory_space<vmem>>, vector<32x256xf32>
    %55 = arith.addf %53, %54 : vector<32x256xf32>
    %cst_39 = arith.constant dense<0xFF800000> : vector<32xf32>
    %56 = vector.multi_reduction <maximumf>, %55, %cst_39 [1] : vector<32x256xf32> to vector<32xf32>
    %57 = vector.shape_cast %56 : vector<32xf32> to vector<32x1xf32>
    %58 = vector.broadcast %57 : vector<32x1xf32> to vector<32x256xf32>
    %59 = arith.subf %55, %58 : vector<32x256xf32>
    %60 = math.exp %59 : vector<32x256xf32>
    %61 = arith.truncf %60 : vector<32x256xf32> to vector<32x256xbf16>
    %c0_40 = arith.constant 0 : index
    %c0_41 = arith.constant 0 : index
    %62 = vector.load %arg10[%c0_40, %c0_41] : memref<256x128xbf16, #tpu.memory_space<vmem>>, vector<256x128xbf16>
    %cst_42 = arith.constant dense<0.000000e+00> : vector<32x128xf32>
    %63 = tpu.matmul %61, %62, %cst_42 {dimension_numbers = #tpu.dot_dimension_numbers<[1], [0], [0], [1], [0, 0, 1, 1], [], []>} : vector<32x256xbf16>, vector<256x128xbf16>, vector<32x128xf32> -> vector<32x128xf32>
    %c0_43 = arith.constant 0 : index
    %c0_44 = arith.constant 0 : index
    %64 = vector.load %arg7[%c0_43, %c0_44] : memref<256x128xbf16, #tpu.memory_space<vmem>>, vector<256x128xbf16>
    %cst_45 = arith.constant dense<0.000000e+00> : vector<32x128xf32>
    %65 = tpu.matmul %61, %64, %cst_45 {dimension_numbers = #tpu.dot_dimension_numbers<[1], [0], [0], [1], [0, 0, 1, 1], [], []>} : vector<32x256xbf16>, vector<256x128xbf16>, vector<32x128xf32> -> vector<32x128xf32>
    %66 = tpu.reciprocal %65 {approx = true} : vector<32x128xf32> -> vector<32x128xf32>
    %67 = arith.mulf %63, %66 : vector<32x128xf32>
    %68 = arith.truncf %67 : vector<32x128xf32> to vector<32x128xbf16>
    %c0_46 = arith.constant 0 : index
    %c0_47 = arith.constant 0 : index
    %69 = vector.load %arg3[%c0_46, %c0_47] : memref<128x128xbf16, #tpu.memory_space<vmem>>, vector<128x128xbf16>
    %cst_48 = arith.constant dense<0.000000e+00> : vector<32x128xf32>
    %70 = tpu.matmul %68, %69, %cst_48 {dimension_numbers = #tpu.dot_dimension_numbers<[1], [0], [0], [1], [0, 0, 1, 1], [], []>} : vector<32x128xbf16>, vector<128x128xbf16>, vector<32x128xf32> -> vector<32x128xf32>
    %71 = arith.truncf %70 : vector<32x128xf32> to vector<32x128xbf16>
    %c0_49 = arith.constant 0 : index
    %c0_50 = arith.constant 0 : index
    %72 = vector.load %arg8[%c0_49, %c0_50] : memref<32x128xbf16, #tpu.memory_space<vmem>>, vector<32x128xbf16>
    tpu.vector_store %arg8[%c0_49, %c0_50], %71 {strides = array<i32>} : memref<32x128xbf16, #tpu.memory_space<vmem>>, vector<32x128xbf16>,
    return
  }
  func.func @transform_0(%arg0: i32) -> (i32, i32) {
    %c0_i32 = arith.constant 0 : i32
    %c0_i32_0 = arith.constant 0 : i32
    %c0_i32_1 = arith.constant 0 : i32
    return %c0_i32, %c0_i32_0 : i32, i32
  }
  func.func @transform_1(%arg0: i32) -> (i32, i32) {
    %c0_i32 = arith.constant 0 : i32
    %c0_i32_0 = arith.constant 0 : i32
    %c0_i32_1 = arith.constant 0 : i32
    return %c0_i32, %c0_i32_0 : i32, i32
  }
  func.func @transform_2(%arg0: i32) -> (i32, i32) {
    %c0_i32 = arith.constant 0 : i32
    %c0_i32_0 = arith.constant 0 : i32
    %c0_i32_1 = arith.constant 0 : i32
    return %c0_i32, %c0_i32_0 : i32, i32
  }
  func.func @transform_3(%arg0: i32) -> (i32, i32) {
    %c0_i32 = arith.constant 0 : i32
    %c0_i32_0 = arith.constant 0 : i32
    %c0_i32_1 = arith.constant 0 : i32
    return %c0_i32, %c0_i32_0 : i32, i32
  }
  func.func @transform_4(%arg0: i32) -> (i32, i32) {
    %c0_i32 = arith.constant 0 : i32
    %c0_i32_0 = arith.constant 0 : i32
    %c0_i32_1 = arith.constant 0 : i32
    return %c0_i32, %c0_i32_0 : i32, i32
  }
  func.func @transform_5(%arg0: i32) -> (i32, i32) {
    %c0_i32 = arith.constant 0 : i32
    %c0_i32_0 = arith.constant 0 : i32
    %c0_i32_1 = arith.constant 0 : i32
    return %c0_i32, %c0_i32_0 : i32, i32
  }
  func.func @transform_6(%arg0: i32) -> (i32, i32) {
    %c0_i32 = arith.constant 0 : i32
    %c0_i32_0 = arith.constant 0 : i32
    %c0_i32_1 = arith.constant 0 : i32
    return %c0_i32, %c0_i32_0 : i32, i32
  }
  func.func @transform_7(%arg0: i32) -> (i32, i32) {
    %c0_i32 = arith.constant 0 : i32
    %c0_i32_0 = arith.constant 0 : i32
    %c0_i32_1 = arith.constant 0 : i32
    return %c0_i32, %c0_i32_0 : i32, i32
  }
}

</mosaic_0001>

<llo_original>
// kernel: tpu_custom_call.1
$region0: #{tpu_custom_call.1}
  #allocation0 [shape = 'u32[]', space=smem, size = 0x4, offset = 0x4, fixed_abs, tag = 'smem constant byte address 0x4 - core index']
  #allocation1 [shape = 'u32[72,128]{1,0:T(1,128)}', space=vmem, size = 0x9000, scoped, tag = 'internal scratch']
  #allocation2 [shape = 'bf16[256,128]{1,0:T(8,128)(2,1)}', space=vmem, size = 0x10000, scoped, tag = 'scratch operand']
  #allocation3 [shape = 'bf16[256,128]{1,0:T(8,128)(2,1)}', space=vmem, size = 0x10000, scoped, tag = 'scratch operand']
  %s0 = inlined_call_operand.vmem [shape: bf16[32,128], index: 0, kind: input, shape index: {}]
  %s1 = inlined_call_operand.vmem [shape: bf16[128,448], index: 1, kind: input, shape index: {}]
  %s2 = inlined_call_operand.vmem [shape: bf16[128,128], index: 2, kind: input, shape index: {}]
  %s3 = inlined_call_operand.vmem [shape: f32[32,192], index: 3, kind: input, shape index: {}]
  %s4 = inlined_call_operand.vmem [shape: f32[32,192], index: 4, kind: input, shape index: {}]
  %s5 = inlined_call_operand.vmem [shape: f32[32,256], index: 5, kind: input, shape index: {}]
  %s6 = inlined_call_operand.vmem [shape: bf16[256,128], index: 6, kind: input, shape index: {}]
  %s7 = inlined_call_operand.hbm [shape: bf16[32,128], index: 7, kind: output, shape index: {}]
  %s8 = sld [smem:[#allocation0]]
  $region38: #{tpu_custom_call.1} parent=0
    _
  %s10 = ssub.s32 1, %s8
  %s11 = scalar_select 0, %s10, %s8
  $region1: #{tpu_custom_call.1} parent=0
    #allocation4 [shape = 'u8[8192]{0}', space=vmem, size = 0x2000, scoped, tag = 'output window, operand 0, single buffered']
    #allocation5 [shape = 's32[1]{0}', space=sflag, size = 0x4, scoped, tag = 'scoped memory for tpu_custom_call.1']
    %12 = vsyncpa [#allocation5], 0
    // Predicated region
    $region2: #{tpu_custom_call.1} parent=1 // pred_check
      _
    $region3: #{tpu_custom_call.1} parent=1 // pred_check_branch
      %14 = sbr.rel (0) target = $region5
    $region4: #{tpu_custom_call.1} parent=1 // pred_region
      _
    $region5: #{tpu_custom_call.1} parent=1 // pred_fallthru
      _
    // Predicated region
    $region6: #{tpu_custom_call.1} parent=1 // pred_check
      _
    $region7: #{tpu_custom_call.1} parent=1 // pred_check_branch
      %16 = sbr.rel (0) target = $region9
    $region8: #{tpu_custom_call.1} parent=1 // pred_region
      _
    $region9: #{tpu_custom_call.1} parent=1 // pred_fallthru
      _
    // Predicated region
    $region10: #{tpu_custom_call.1} parent=1 // pred_check
      _
    $region11: #{tpu_custom_call.1} parent=1 // pred_check_branch
      %18 = sbr.rel (0) target = $region13
    $region12: #{tpu_custom_call.1} parent=1 // pred_region
      _
    $region13: #{tpu_custom_call.1} parent=1 // pred_fallthru
      _
    // Predicated region
    $region14: #{tpu_custom_call.1} parent=1 // pred_check
      _
    $region15: #{tpu_custom_call.1} parent=1 // pred_check_branch
      %20 = sbr.rel (0) target = $region17
    $region16: #{tpu_custom_call.1} parent=1 // pred_region
      _
    $region17: #{tpu_custom_call.1} parent=1 // pred_fallthru
      _
    // Predicated region
    $region18: #{tpu_custom_call.1} parent=1 // pred_check
      _
    $region19: #{tpu_custom_call.1} parent=1 // pred_check_branch
      %22 = sbr.rel (0) target = $region21
    $region20: #{tpu_custom_call.1} parent=1 // pred_region
      _
    $region21: #{tpu_custom_call.1} parent=1 // pred_fallthru
      _
    // Predicated region
    $region22: #{tpu_custom_call.1} parent=1 // pred_check
      _
    $region23: #{tpu_custom_call.1} parent=1 // pred_check_branch
      %24 = sbr.rel (0) target = $region25
    $region24: #{tpu_custom_call.1} parent=1 // pred_region
      _
    $region25: #{tpu_custom_call.1} parent=1 // pred_fallthru
      _
    // Predicated region
    $region26: #{tpu_custom_call.1} parent=1 // pred_check
      _
    $region27: #{tpu_custom_call.1} parent=1 // pred_check_branch
      %26 = sbr.rel (0) target = $region29
    $region28: #{tpu_custom_call.1} parent=1 // pred_region
      _
    $region29: #{tpu_custom_call.1} parent=1 // pred_fallthru
      _
    %v28 = vld [vmem:[%s0] sm:$0xf]
    %v29 = vld [vmem:[%s0 + $0x4] sm:$0xf]
    %v30 = vld [vmem:[%s0 + $0x8] sm:$0xf]
    %v31 = vld [vmem:[%s0 + $0xc] sm:$0xf]
    %v32 = vld [vmem:[%s1] sm:$0xff]
    %v33 = vld [vmem:[%s1 + $0x8] sm:$0xff]
    %v34 = vld [vmem:[%s1 + $0x10] sm:$0xff]
    %v35 = vld [vmem:[%s1 + $0x18] sm:$0xff]
    %v36 = vld [vmem:[%s1 + $0x20] sm:$0xff]
    %v37 = vld [vmem:[%s1 + $0x28] sm:$0xff]
    %v38 = vld [vmem:[%s1 + $0x30] sm:$0xff]
    %v39 = vld [vmem:[%s1 + $0x38] sm:$0xff]
    %v40 = vld [vmem:[%s1 + $0x40] sm:$0xff]
    %v41 = vld [vmem:[%s1 + $0x48] sm:$0xff]
    %v42 = vld [vmem:[%s1 + $0x50] sm:$0xff]
    %v43 = vld [vmem:[%s1 + $0x58] sm:$0xff]
    %v44 = vld [vmem:[%s1 + $0x60] sm:$0xff]
    %v45 = vld [vmem:[%s1 + $0x68] sm:$0xff]
    %v46 = vld [vmem:[%s1 + $0x70] sm:$0xff]
    %v47 = vld [vmem:[%s1 + $0x78] sm:$0xff]
    %v48 = vld [vmem:[%s1 + $0x80] sm:$0xff]
    %v49 = vld [vmem:[%s1 + $0x88] sm:$0xff]
    %v50 = vld [vmem:[%s1 + $0x90] sm:$0xff]
    %v51 = vld [vmem:[%s1 + $0x98] sm:$0xff]
    %v52 = vld [vmem:[%s1 + $0xa0] sm:$0xff]
    %v53 = vld [vmem:[%s1 + $0xa8] sm:$0xff]
    %v54 = vld [vmem:[%s1 + $0xb0] sm:$0xff]
    %v55 = vld [vmem:[%s1 + $0xb8] sm:$0xff]
    %v56 = vld [vmem:[%s1 + $0xc0] sm:$0xff]
    %v57 = vld [vmem:[%s1 + $0xc8] sm:$0xff]
    %v58 = vld [vmem:[%s1 + $0xd0] sm:$0xff]
    %v59 = vld [vmem:[%s1 + $0xd8] sm:$0xff]
    %v60 = vld [vmem:[%s1 + $0xe0] sm:$0xff]
    %v61 = vld [vmem:[%s1 + $0xe8] sm:$0xff]
    %v62 = vld [vmem:[%s1 + $0xf0] sm:$0xff]
    %v63 = vld [vmem:[%s1 + $0xf8] sm:$0xff]
    %v68 = vunpack.c.l.b16 %v28
    %v69 = vunpack.c.l.b16 %v29
    %v70 = vunpack.c.l.b16 %v30
    %v71 = vunpack.c.l.b16 %v31
    %v72 = vpack.c.b16 %v69, %v68
    %v73 = vpack.c.b16 %v71, %v70
    %v108 = vunpack.c.l.b16 %v32
    %v109 = vunpack.c.h.b16 %v32
    %v110 = vunpack.c.l.b16 %v33
    %v111 = vunpack.c.h.b16 %v33
    %v112 = vunpack.c.l.b16 %v34
    %v113 = vunpack.c.h.b16 %v34
    %v114 = vunpack.c.l.b16 %v35
    %v115 = vunpack.c.h.b16 %v35
    %v116 = vunpack.c.l.b16 %v36
    %v117 = vunpack.c.h.b16 %v36
    %v118 = vunpack.c.l.b16 %v37
    %v119 = vunpack.c.h.b16 %v37
    %v120 = vunpack.c.l.b16 %v38
    %v121 = vunpack.c.h.b16 %v38
    %v122 = vunpack.c.l.b16 %v39
    %v123 = vunpack.c.h.b16 %v39
    %v124 = vunpack.c.l.b16 %v40
    %v125 = vunpack.c.h.b16 %v40
    %v126 = vunpack.c.l.b16 %v41
    %v127 = vunpack.c.h.b16 %v41
    %v128 = vunpack.c.l.b16 %v42
    %v129 = vunpack.c.h.b16 %v42
    %v130 = vunpack.c.l.b16 %v43
    %v131 = vunpack.c.h.b16 %v43
    %v132 = vunpack.c.l.b16 %v44
    %v133 = vunpack.c.h.b16 %v44
    %v134 = vunpack.c.l.b16 %v45
    %v135 = vunpack.c.h.b16 %v45
    %v136 = vunpack.c.l.b16 %v46
    %v137 = vunpack.c.h.b16 %v46
    %v138 = vunpack.c.l.b16 %v47
    %v139 = vunpack.c.h.b16 %v47
    %v140 = vunpack.c.l.b16 %v48
    %v141 = vunpack.c.h.b16 %v48
    %v142 = vunpack.c.l.b16 %v49
    %v143 = vunpack.c.h.b16 %v49
    %v144 = vunpack.c.l.b16 %v50
    %v145 = vunpack.c.h.b16 %v50
    %v146 = vunpack.c.l.b16 %v51
    %v147 = vunpack.c.h.b16 %v51
    %v148 = vunpack.c.l.b16 %v52
    %v149 = vunpack.c.h.b16 %v52
    %v150 = vunpack.c.l.b16 %v53
    %v151 = vunpack.c.h.b16 %v53
    %v152 = vunpack.c.l.b16 %v54
    %v153 = vunpack.c.h.b16 %v54
    %v154 = vunpack.c.l.b16 %v55
    %v155 = vunpack.c.h.b16 %v55
    %v156 = vunpack.c.l.b16 %v56
    %v157 = vunpack.c.h.b16 %v56
    %v158 = vunpack.c.l.b16 %v57
    %v159 = vunpack.c.h.b16 %v57
    %v160 = vunpack.c.l.b16 %v58
    %v161 = vunpack.c.h.b16 %v58
    %v162 = vunpack.c.l.b16 %v59
    %v163 = vunpack.c.h.b16 %v59
    %v164 = vunpack.c.l.b16 %v60
    %v165 = vunpack.c.h.b16 %v60
    %v166 = vunpack.c.l.b16 %v61
    %v167 = vunpack.c.h.b16 %v61
    %v168 = vunpack.c.l.b16 %v62
    %v169 = vunpack.c.h.b16 %v62
    %v170 = vunpack.c.l.b16 %v63
    %v171 = vunpack.c.h.b16 %v63
    %v172 = vpack.c.b16 %v112, %v108
    %v173 = vpack.c.b16 %v113, %v109
    %v174 = vpack.c.b16 %v114, %v110
    %v175 = vpack.c.b16 %v115, %v111
    %v176 = vpack.c.b16 %v120, %v116
    %v177 = vpack.c.b16 %v121, %v117
    %v178 = vpack.c.b16 %v122, %v118
    %v179 = vpack.c.b16 %v123, %v119
    %v180 = vpack.c.b16 %v128, %v124
    %v181 = vpack.c.b16 %v129, %v125
    %v182 = vpack.c.b16 %v130, %v126
    %v183 = vpack.c.b16 %v131, %v127
    %v184 = vpack.c.b16 %v136, %v132
    %v185 = vpack.c.b16 %v137, %v133
    %v186 = vpack.c.b16 %v138, %v134
    %v187 = vpack.c.b16 %v139, %v135
    %v188 = vpack.c.b16 %v144, %v140
    %v189 = vpack.c.b16 %v145, %v141
    %v190 = vpack.c.b16 %v146, %v142
    %v191 = vpack.c.b16 %v147, %v143
    %v192 = vpack.c.b16 %v152, %v148
    %v193 = vpack.c.b16 %v153, %v149
    %v194 = vpack.c.b16 %v154, %v150
    %v195 = vpack.c.b16 %v155, %v151
    %v196 = vpack.c.b16 %v160, %v156
    %v197 = vpack.c.b16 %v161, %v157
    %v198 = vpack.c.b16 %v162, %v158
    %v199 = vpack.c.b16 %v163, %v159
    %v200 = vpack.c.b16 %v168, %v164
    %v201 = vpack.c.b16 %v169, %v165
    %v202 = vpack.c.b16 %v170, %v166
    %v203 = vpack.c.b16 %v171, %v167
    %236 = vmatpush.bf16.msra.mxu0 %v200
    %237 = vmatpush.bf16.msra.mxu0 %v196
    %238 = vmatpush.bf16.msra.mxu0 %v192
    %239 = vmatpush.bf16.msra.mxu0 %v188
    %240 = vmatpush.bf16.msra.mxu0 %v184
    %241 = vmatpush.bf16.msra.mxu0 %v180
    %242 = vmatpush.bf16.msra.mxu0 %v176
    %243 = vmatpush.bf16.msra.mxu0 %v172
    %244 = vmatmul.bf16.gmra.mxu0 %v72
    %v245 = vpop.f32.mrf.mxu0
    %v246 = vadd.f32 0.0, %v245
    %v247 = vpop.f32.mrf.mxu0
    %v248 = vadd.f32 0.0, %v247
    %249 = vmatmul.bf16.gmra.mxu0 %v73
    %v250 = vpop.f32.mrf.mxu0
    %v251 = vadd.f32 0.0, %v250
    %v252 = vpop.f32.mrf.mxu0
    %v253 = vadd.f32 0.0, %v252
    %254 = vdwg.mxu0
    %255 = vmatpush.bf16.msra.mxu0 %v201
    %256 = vmatpush.bf16.msra.mxu0 %v197
    %257 = vmatpush.bf16.msra.mxu0 %v193
    %258 = vmatpush.bf16.msra.mxu0 %v189
    %259 = vmatpush.bf16.msra.mxu0 %v185
    %260 = vmatpush.bf16.msra.mxu0 %v181
    %261 = vmatpush.bf16.msra.mxu0 %v177
    %262 = vmatpush.bf16.msra.mxu0 %v173
    %263 = vmatmul.bf16.gmra.mxu0 %v72
    %v264 = vpop.f32.mrf.mxu0
    %v265 = vadd.f32 0.0, %v264
    %v266 = vpop.f32.mrf.mxu0
    %v267 = vadd.f32 0.0, %v266
    %268 = vmatmul.bf16.gmra.mxu0 %v73
    %v269 = vpop.f32.mrf.mxu0
    %v270 = vadd.f32 0.0, %v269
    %v271 = vpop.f32.mrf.mxu0
    %v272 = vadd.f32 0.0, %v271
    %273 = vdwg.mxu0
    %274 = vmatpush.bf16.msra.mxu0 %v202
    %275 = vmatpush.bf16.msra.mxu0 %v198
    %276 = vmatpush.bf16.msra.mxu0 %v194
    %277 = vmatpush.bf16.msra.mxu0 %v190
    %278 = vmatpush.bf16.msra.mxu0 %v186
    %279 = vmatpush.bf16.msra.mxu0 %v182
    %280 = vmatpush.bf16.msra.mxu0 %v178
    %281 = vmatpush.bf16.msra.mxu0 %v174
    %282 = vmatmul.bf16.gmra.mxu0 %v72
    %v283 = vpop.f32.mrf.mxu0
    %v284 = vadd.f32 0.0, %v283
    %v285 = vpop.f32.mrf.mxu0
    %v286 = vadd.f32 0.0, %v285
    %287 = vmatmul.bf16.gmra.mxu0 %v73
    %v288 = vpop.f32.mrf.mxu0
    %v289 = vadd.f32 0.0, %v288
    %v290 = vpop.f32.mrf.mxu0
    %v291 = vadd.f32 0.0, %v290
    %292 = vdwg.mxu0
    %293 = vmatpush.bf16.msra.mxu0 %v203
    %294 = vmatpush.bf16.msra.mxu0 %v199
    %295 = vmatpush.bf16.msra.mxu0 %v195
    %296 = vmatpush.bf16.msra.mxu0 %v191
    %297 = vmatpush.bf16.msra.mxu0 %v187
    %298 = vmatpush.bf16.msra.mxu0 %v183
    %299 = vmatpush.bf16.msra.mxu0 %v179
    %300 = vmatpush.bf16.msra.mxu0 %v175
    %301 = vmatmul.bf16.gmra.mxu0 %v72
    %v302 = vpop.f32.mrf.mxu0
    %v303 = vadd.f32 0.0, %v302
    %v304 = vpop.f32.mrf.mxu0
    %v305 = vadd.f32 0.0, %v304
    %306 = vmatmul.bf16.gmra.mxu0 %v73
    %v307 = vpop.f32.mrf.mxu0
    %v308 = vadd.f32 0.0, %v307
    %v309 = vpop.f32.mrf.mxu0
    %v310 = vadd.f32 0.0, %v309
    %311 = vdwg.mxu0
    %v312 = vld [vmem:[%s3] sm:$0xff]
    %v313 = vld [vmem:[%s3 + $0x8] sm:$0xff]
    %v314 = vld [vmem:[%s3 + $0x10] sm:$0xff]
    %v315 = vld [vmem:[%s3 + $0x18] sm:$0xff]
    %v316 = vld [vmem:[%s3 + $0x20] sm:$0xff]
    %v317 = vld [vmem:[%s3 + $0x28] sm:$0xff]
    %v318 = vld [vmem:[%s3 + $0x30] sm:$0xff]
    %v319 = vld [vmem:[%s3 + $0x38] sm:$0xff]
    %v320 = vmul.f32 %v246, %v312
    %v321 = vmul.f32 %v265, %v313
    %v322 = vmul.f32 %v248, %v314
    %v323 = vmul.f32 %v267, %v315
    %v324 = vmul.f32 %v251, %v316
    %v325 = vmul.f32 %v270, %v317
    %v326 = vmul.f32 %v253, %v318
    %v327 = vmul.f32 %v272, %v319
    %v328 = vld [vmem:[%s4] sm:$0xff]
    %v329 = vld [vmem:[%s4 + $0x8] sm:$0xff]
    %v330 = vld [vmem:[%s4 + $0x10] sm:$0xff]
    %v331 = vld [vmem:[%s4 + $0x18] sm:$0xff]
    %v332 = vld [vmem:[%s4 + $0x20] sm:$0xff]
    %v333 = vld [vmem:[%s4 + $0x28] sm:$0xff]
    %v334 = vld [vmem:[%s4 + $0x30] sm:$0xff]
    %v335 = vld [vmem:[%s4 + $0x38] sm:$0xff]
    %344 = vrot.lane.b32.xlu0 %v328, 64
    %v345 = vpop.permute.xlu0 %344
    %346 = vrot.lane.b32.xlu0 %v329, 64
    %v347 = vpop.permute.xlu0 %346
    %348 = vrot.lane.b32.xlu0 %v330, 64
    %v349 = vpop.permute.xlu0 %348
    %350 = vrot.lane.b32.xlu0 %v331, 64
    %v351 = vpop.permute.xlu0 %350
    %352 = vrot.lane.b32.xlu0 %v332, 64
    %v353 = vpop.permute.xlu0 %352
    %354 = vrot.lane.b32.xlu0 %v333, 64
    %v355 = vpop.permute.xlu0 %354
    %356 = vrot.lane.b32.xlu0 %v334, 64
    %v357 = vpop.permute.xlu0 %356
    %358 = vrot.lane.b32.xlu0 %v335, 64
    %v359 = vpop.permute.xlu0 %358
    %vm360 = vcmask 523264
    %v361 = vsel %vm360, %v345, %v347
    %v362 = vsel %vm360, %v349, %v351
    %v363 = vsel %vm360, %v353, %v355
    %v364 = vsel %vm360, %v357, %v359
    %v373 = vmul.f32 %v265, %v345
    %v374 = vmul.f32 %v284, %v361
    %v375 = vmul.f32 %v267, %v349
    %v376 = vmul.f32 %v286, %v362
    %v377 = vmul.f32 %v270, %v353
    %v378 = vmul.f32 %v289, %v363
    %v379 = vmul.f32 %v272, %v357
    %v380 = vmul.f32 %v291, %v364
    %389 = vrot.lane.b32.xlu0 %v373, 64
    %v390 = vpop.permute.xlu0 %389
    %391 = vrot.lane.b32.xlu0 %v374, 64
    %v392 = vpop.permute.xlu0 %391
    %393 = vrot.lane.b32.xlu0 %v375, 64
    %v394 = vpop.permute.xlu0 %393
    %395 = vrot.lane.b32.xlu0 %v376, 64
    %v396 = vpop.permute.xlu0 %395
    %397 = vrot.lane.b32.xlu0 %v377, 64
    %v398 = vpop.permute.xlu0 %397
    %399 = vrot.lane.b32.xlu0 %v378, 64
    %v400 = vpop.permute.xlu0 %399
    %401 = vrot.lane.b32.xlu0 %v379, 64
    %v402 = vpop.permute.xlu0 %401
    %403 = vrot.lane.b32.xlu0 %v380, 64
    %v404 = vpop.permute.xlu0 %403
    %v405 = vsel %vm360, %v390, %v392
    %v406 = vsel %vm360, %v394, %v396
    %v407 = vsel %vm360, %v398, %v400
    %v408 = vsel %vm360, %v402, %v404
    %v417 = vadd.f32 %v320, %v405
    %v418 = vadd.f32 %v321, %v392
    %v419 = vadd.f32 %v322, %v406
    %v420 = vadd.f32 %v323, %v396
    %v421 = vadd.f32 %v324, %v407
    %v422 = vadd.f32 %v325, %v400
    %v423 = vadd.f32 %v326, %v408
    %v424 = vadd.f32 %v327, %v404
    %v425 = vpack.c.bf16 %v419, %v417
    %v426 = vpack.c.bf16 %v423, %v421
    %v427 = vpack.c.bf16 %v418, %v418
    %v428 = vpack.c.bf16 %v420, %v420
    %v429 = vpack.c.bf16 %v422, %v422
    %v430 = vpack.c.bf16 %v424, %v424
    %v431 = vpack.c.bf16 %v303, %v303
    %v432 = vpack.c.bf16 %v305, %v305
    %v433 = vpack.c.bf16 %v308, %v308
    %v434 = vpack.c.bf16 %v310, %v310
    %435 = vst [vmem:[#allocation2] sm:$0xf] 0
    %436 = vst [vmem:[#allocation2 + $0x4] sm:$0xf] 0
    %437 = vst [vmem:[#allocation2 + $0x8] sm:$0xf] 0
    %438 = vst [vmem:[#allocation2 + $0xc] sm:$0xf] 0
    %439 = vst [vmem:[#allocation2 + $0x10] sm:$0xf] 0
    %440 = vst [vmem:[#allocation2 + $0x14] sm:$0xf] 0
    %441 = vst [vmem:[#allocation2 + $0x18] sm:$0xf] 0
    %442 = vst [vmem:[#allocation2 + $0x1c] sm:$0xf] 0
    %443 = vst [vmem:[#allocation2 + $0x20] sm:$0xf] 0
    %444 = vst [vmem:[#allocation2 + $0x24] sm:$0xf] 0
    %445 = vst [vmem:[#allocation2 + $0x28] sm:$0xf] 0
    %446 = vst [vmem:[#allocation2 + $0x2c] sm:$0xf] 0
    %447 = vst [vmem:[#allocation2 + $0x30] sm:$0xf] 0
    %448 = vst [vmem:[#allocation2 + $0x34] sm:$0xf] 0
    %449 = vst [vmem:[#allocation2 + $0x38] sm:$0xf] 0
    %450 = vst [vmem:[#allocation2 + $0x3c] sm:$0xf] 0
    %451 = vst [vmem:[#allocation2 + $0x40] sm:$0xf] 0
    %452 = vst [vmem:[#allocation2 + $0x44] sm:$0xf] 0
    %453 = vst [vmem:[#allocation2 + $0x48] sm:$0xf] 0
    %454 = vst [vmem:[#allocation2 + $0x4c] sm:$0xf] 0
    %455 = vst [vmem:[#allocation2 + $0x50] sm:$0xf] 0
    %456 = vst [vmem:[#allocation2 + $0x54] sm:$0xf] 0
    %457 = vst [vmem:[#allocation2 + $0x58] sm:$0xf] 0
    %458 = vst [vmem:[#allocation2 + $0x5c] sm:$0xf] 0
    %459 = vst [vmem:[#allocation2 + $0x60] sm:$0xf] 0
    %460 = vst [vmem:[#allocation2 + $0x64] sm:$0xf] 0
    %461 = vst [vmem:[#allocation2 + $0x68] sm:$0xf] 0
    %462 = vst [vmem:[#allocation2 + $0x6c] sm:$0xf] 0
    %463 = vst [vmem:[#allocation2 + $0x70] sm:$0xf] 0
    %464 = vst [vmem:[#allocation2 + $0x74] sm:$0xf] 0
    %465 = vst [vmem:[#allocation2 + $0x78] sm:$0xf] 0
    %466 = vst [vmem:[#allocation2 + $0x7c] sm:$0xf] 0
    %467 = vst [vmem:[#allocation3] sm:$0xf] 0
    %468 = vst [vmem:[#allocation3 + $0x4] sm:$0xf] 0
    %469 = vst [vmem:[#allocation3 + $0x8] sm:$0xf] 0
    %470 = vst [vmem:[#allocation3 + $0xc] sm:$0xf] 0
    %471 = vst [vmem:[#allocation3 + $0x10] sm:$0xf] 0
    %472 = vst [vmem:[#allocation3 + $0x14] sm:$0xf] 0
    %473 = vst [vmem:[#allocation3 + $0x18] sm:$0xf] 0
    %474 = vst [vmem:[#allocation3 + $0x1c] sm:$0xf] 0
    %475 = vst [vmem:[#allocation3 + $0x20] sm:$0xf] 0
    %476 = vst [vmem:[#allocation3 + $0x24] sm:$0xf] 0
    %477 = vst [vmem:[#allocation3 + $0x28] sm:$0xf] 0
    %478 = vst [vmem:[#allocation3 + $0x2c] sm:$0xf] 0
    %479 = vst [vmem:[#allocation3 + $0x30] sm:$0xf] 0
    %480 = vst [vmem:[#allocation3 + $0x34] sm:$0xf] 0
    %481 = vst [vmem:[#allocation3 + $0x38] sm:$0xf] 0
    %482 = vst [vmem:[#allocation3 + $0x3c] sm:$0xf] 0
    %483 = vst [vmem:[#allocation3 + $0x40] sm:$0xf] 0
    %484 = vst [vmem:[#allocation3 + $0x44] sm:$0xf] 0
    %485 = vst [vmem:[#allocation3 + $0x48] sm:$0xf] 0
    %486 = vst [vmem:[#allocation3 + $0x4c] sm:$0xf] 0
    %487 = vst [vmem:[#allocation3 + $0x50] sm:$0xf] 0
    %488 = vst [vmem:[#allocation3 + $0x54] sm:$0xf] 0
    %489 = vst [vmem:[#allocation3 + $0x58] sm:$0xf] 0
    %490 = vst [vmem:[#allocation3 + $0x5c] sm:$0xf] 0
    %491 = vst [vmem:[#allocation3 + $0x60] sm:$0xf] 0
    %492 = vst [vmem:[#allocation3 + $0x64] sm:$0xf] 0
    %493 = vst [vmem:[#allocation3 + $0x68] sm:$0xf] 0
    %494 = vst [vmem:[#allocation3 + $0x6c] sm:$0xf] 0
    %495 = vst [vmem:[#allocation3 + $0x70] sm:$0xf] 0
    %496 = vst [vmem:[#allocation3 + $0x74] sm:$0xf] 0
    %497 = vst [vmem:[#allocation3 + $0x78] sm:$0xf] 0
    %498 = vst [vmem:[#allocation3 + $0x7c] sm:$0xf] 0
    %vm499 = vcmask 125952
    %500 = vst.msk [vmem:[#allocation2] sm:$0xf] %vm499, %v427
    %501 = vst.msk [vmem:[#allocation2 + $0x4] sm:$0xf] %vm499, %v428
    %502 = vst.msk [vmem:[#allocation2 + $0x8] sm:$0xf] %vm499, %v429
    %503 = vst.msk [vmem:[#allocation2 + $0xc] sm:$0xf] %vm499, %v430
    %504 = vst.msk [vmem:[#allocation3] sm:$0xf] %vm499, %v431
    %505 = vst.msk [vmem:[#allocation3 + $0x4] sm:$0xf] %vm499, %v432
    %506 = vst.msk [vmem:[#allocation3 + $0x8] sm:$0xf] %vm499, %v433
    %507 = vst.msk [vmem:[#allocation3 + $0xc] sm:$0xf] %vm499, %v434
    %512 = vrot.lane.b32.xlu0 %v427, 16
    %v513 = vpop.permute.xlu0 %512
    %514 = vrot.lane.b32.xlu0 %v428, 16
    %v515 = vpop.permute.xlu0 %514
    %516 = vrot.lane.b32.xlu0 %v429, 16
    %v517 = vpop.permute.xlu0 %516
    %518 = vrot.lane.b32.xlu0 %v430, 16
    %v519 = vpop.permute.xlu0 %518
    %vm524 = vcmask 257152
    %525 = vst.msk [vmem:[#allocation2 + $0x10] sm:$0xf] %vm524, %v513
    %526 = vst.msk [vmem:[#allocation2 + $0x14] sm:$0xf] %vm524, %v515
    %527 = vst.msk [vmem:[#allocation2 + $0x18] sm:$0xf] %vm524, %v517
    %528 = vst.msk [vmem:[#allocation2 + $0x1c] sm:$0xf] %vm524, %v519
    %533 = vrot.lane.b32.xlu0 %v431, 16
    %v534 = vpop.permute.xlu0 %533
    %535 = vrot.lane.b32.xlu0 %v432, 16
    %v536 = vpop.permute.xlu0 %535
    %537 = vrot.lane.b32.xlu0 %v433, 16
    %v538 = vpop.permute.xlu0 %537
    %539 = vrot.lane.b32.xlu0 %v434, 16
    %v540 = vpop.permute.xlu0 %539
    %545 = vst.msk [vmem:[#allocation3 + $0x10] sm:$0xf] %vm524, %v534
    %546 = vst.msk [vmem:[#allocation3 + $0x14] sm:$0xf] %vm524, %v536
    %547 = vst.msk [vmem:[#allocation3 + $0x18] sm:$0xf] %vm524, %v538
    %548 = vst.msk [vmem:[#allocation3 + $0x1c] sm:$0xf] %vm524, %v540
    %vm549 = vcmask 388352
    %550 = vst.msk [vmem:[#allocation2 + $0x20] sm:$0xf] %vm549, %v513
    %551 = vst.msk [vmem:[#allocation2 + $0x24] sm:$0xf] %vm549, %v515
    %552 = vst.msk [vmem:[#allocation2 + $0x28] sm:$0xf] %vm549, %v517
    %553 = vst.msk [vmem:[#allocation2 + $0x2c] sm:$0xf] %vm549, %v519
    %554 = vst.msk [vmem:[#allocation3 + $0x20] sm:$0xf] %vm549, %v534
    %555 = vst.msk [vmem:[#allocation3 + $0x24] sm:$0xf] %vm549, %v536
    %556 = vst.msk [vmem:[#allocation3 + $0x28] sm:$0xf] %vm549, %v538
    %557 = vst.msk [vmem:[#allocation3 + $0x2c] sm:$0xf] %vm549, %v540
    %558 = vrot.lane.b32.xlu0 %v427, 32
    %v559 = vpop.permute.xlu0 %558
    %560 = vrot.lane.b32.xlu0 %v428, 32
    %v561 = vpop.permute.xlu0 %560
    %562 = vrot.lane.b32.xlu0 %v429, 32
    %v563 = vpop.permute.xlu0 %562
    %564 = vrot.lane.b32.xlu0 %v430, 32
    %v565 = vpop.permute.xlu0 %564
    %vm570 = vcmask 519552
    %571 = vst.msk [vmem:[#allocation2 + $0x30] sm:$0xf] %vm570, %v559
    %572 = vst.msk [vmem:[#allocation2 + $0x34] sm:$0xf] %vm570, %v561
    %573 = vst.msk [vmem:[#allocation2 + $0x38] sm:$0xf] %vm570, %v563
    %574 = vst.msk [vmem:[#allocation2 + $0x3c] sm:$0xf] %vm570, %v565
    %575 = vrot.lane.b32.xlu0 %v431, 32
    %v576 = vpop.permute.xlu0 %575
    %577 = vrot.lane.b32.xlu0 %v432, 32
    %v578 = vpop.permute.xlu0 %577
    %579 = vrot.lane.b32.xlu0 %v433, 32
    %v580 = vpop.permute.xlu0 %579
    %581 = vrot.lane.b32.xlu0 %v434, 32
    %v582 = vpop.permute.xlu0 %581
    %587 = vst.msk [vmem:[#allocation3 + $0x30] sm:$0xf] %vm570, %v576
    %588 = vst.msk [vmem:[#allocation3 + $0x34] sm:$0xf] %vm570, %v578
    %589 = vst.msk [vmem:[#allocation3 + $0x38] sm:$0xf] %vm570, %v580
    %590 = vst.msk [vmem:[#allocation3 + $0x3c] sm:$0xf] %vm570, %v582
    %vm591 = vcmask 650752
    %592 = vst.msk [vmem:[#allocation2 + $0x40] sm:$0xf] %vm591, %v559
    %593 = vst.msk [vmem:[#allocation2 + $0x44] sm:$0xf] %vm591, %v561
    %594 = vst.msk [vmem:[#allocation2 + $0x48] sm:$0xf] %vm591, %v563
    %595 = vst.msk [vmem:[#allocation2 + $0x4c] sm:$0xf] %vm591, %v565
    %596 = vst.msk [vmem:[#allocation3 + $0x40] sm:$0xf] %vm591, %v576
    %597 = vst.msk [vmem:[#allocation3 + $0x44] sm:$0xf] %vm591, %v578
    %598 = vst.msk [vmem:[#allocation3 + $0x48] sm:$0xf] %vm591, %v580
    %599 = vst.msk [vmem:[#allocation3 + $0x4c] sm:$0xf] %vm591, %v582
    %600 = vrot.lane.b32.xlu0 %v427, 48
    %v601 = vpop.permute.xlu0 %600
    %602 = vrot.lane.b32.xlu0 %v428, 48
    %v603 = vpop.permute.xlu0 %602
    %604 = vrot.lane.b32.xlu0 %v429, 48
    %v605 = vpop.permute.xlu0 %604
    %606 = vrot.lane.b32.xlu0 %v430, 48
    %v607 = vpop.permute.xlu0 %606
    %vm612 = vcmask 781952
    %613 = vst.msk [vmem:[#allocation2 + $0x50] sm:$0xf] %vm612, %v601
    %614 = vst.msk [vmem:[#allocation2 + $0x54] sm:$0xf] %vm612, %v603
    %615 = vst.msk [vmem:[#allocation2 + $0x58] sm:$0xf] %vm612, %v605
    %616 = vst.msk [vmem:[#allocation2 + $0x5c] sm:$0xf] %vm612, %v607
    %617 = vrot.lane.b32.xlu0 %v431, 48
    %v618 = vpop.permute.xlu0 %617
    %619 = vrot.lane.b32.xlu0 %v432, 48
    %v620 = vpop.permute.xlu0 %619
    %621 = vrot.lane.b32.xlu0 %v433, 48
    %v622 = vpop.permute.xlu0 %621
    %623 = vrot.lane.b32.xlu0 %v434, 48
    %v624 = vpop.permute.xlu0 %623
    %629 = vst.msk [vmem:[#allocation3 + $0x50] sm:$0xf] %vm612, %v618
    %630 = vst.msk [vmem:[#allocation3 + $0x54] sm:$0xf] %vm612, %v620
    %631 = vst.msk [vmem:[#allocation3 + $0x58] sm:$0xf] %vm612, %v622
    %632 = vst.msk [vmem:[#allocation3 + $0x5c] sm:$0xf] %vm612, %v624
    %vm633 = vcmask 913152
    %634 = vst.msk [vmem:[#allocation2 + $0x60] sm:$0xf] %vm633, %v601
    %635 = vst.msk [vmem:[#allocation2 + $0x64] sm:$0xf] %vm633, %v603
    %636 = vst.msk [vmem:[#allocation2 + $0x68] sm:$0xf] %vm633, %v605
    %637 = vst.msk [vmem:[#allocation2 + $0x6c] sm:$0xf] %vm633, %v607
    %638 = vst.msk [vmem:[#allocation3 + $0x60] sm:$0xf] %vm633, %v618
    %639 = vst.msk [vmem:[#allocation3 + $0x64] sm:$0xf] %vm633, %v620
    %640 = vst.msk [vmem:[#allocation3 + $0x68] sm:$0xf] %vm633, %v622
    %641 = vst.msk [vmem:[#allocation3 + $0x6c] sm:$0xf] %vm633, %v624
    %642 = vrot.lane.b32.xlu0 %v427, 64
    %v643 = vpop.permute.xlu0 %642
    %644 = vrot.lane.b32.xlu0 %v428, 64
    %v645 = vpop.permute.xlu0 %644
    %646 = vrot.lane.b32.xlu0 %v429, 64
    %v647 = vpop.permute.xlu0 %646
    %648 = vrot.lane.b32.xlu0 %v430, 64
    %v649 = vpop.permute.xlu0 %648
    %vm654 = vcmask 1044352
    %655 = vst.msk [vmem:[#allocation2 + $0x70] sm:$0xf] %vm654, %v643
    %656 = vst.msk [vmem:[#allocation2 + $0x74] sm:$0xf] %vm654, %v645
    %657 = vst.msk [vmem:[#allocation2 + $0x78] sm:$0xf] %vm654, %v647
    %658 = vst.msk [vmem:[#allocation2 + $0x7c] sm:$0xf] %vm654, %v649
    %659 = vrot.lane.b32.xlu0 %v431, 64
    %v660 = vpop.permute.xlu0 %659
    %661 = vrot.lane.b32.xlu0 %v432, 64
    %v662 = vpop.permute.xlu0 %661
    %663 = vrot.lane.b32.xlu0 %v433, 64
    %v664 = vpop.permute.xlu0 %663
    %665 = vrot.lane.b32.xlu0 %v434, 64
    %v666 = vpop.permute.xlu0 %665
    %671 = vst.msk [vmem:[#allocation3 + $0x70] sm:$0xf] %vm654, %v660
    %672 = vst.msk [vmem:[#allocation3 + $0x74] sm:$0xf] %vm654, %v662
    %673 = vst.msk [vmem:[#allocation3 + $0x78] sm:$0xf] %vm654, %v664
    %674 = vst.msk [vmem:[#allocation3 + $0x7c] sm:$0xf] %vm654, %v666
    %v675 = vld [vmem:[#allocation2] sm:$0xf]
    %v676 = vld [vmem:[#allocation2 + $0x4] sm:$0xf]
    %v677 = vld [vmem:[#allocation2 + $0x8] sm:$0xf]
    %v678 = vld [vmem:[#allocation2 + $0xc] sm:$0xf]
    %v679 = vld [vmem:[#allocation2 + $0x10] sm:$0xf]
    %v680 = vld [vmem:[#allocation2 + $0x14] sm:$0xf]
    %v681 = vld [vmem:[#allocation2 + $0x18] sm:$0xf]
    %v682 = vld [vmem:[#allocation2 + $0x1c] sm:$0xf]
    %v683 = vld [vmem:[#allocation2 + $0x20] sm:$0xf]
    %v684 = vld [vmem:[#allocation2 + $0x24] sm:$0xf]
    %v685 = vld [vmem:[#allocation2 + $0x28] sm:$0xf]
    %v686 = vld [vmem:[#allocation2 + $0x2c] sm:$0xf]
    %v687 = vld [vmem:[#allocation2 + $0x30] sm:$0xf]
    %v688 = vld [vmem:[#allocation2 + $0x34] sm:$0xf]
    %v689 = vld [vmem:[#allocation2 + $0x38] sm:$0xf]
    %v690 = vld [vmem:[#allocation2 + $0x3c] sm:$0xf]
    %v691 = vld [vmem:[#allocation2 + $0x40] sm:$0xf]
    %v692 = vld [vmem:[#allocation2 + $0x44] sm:$0xf]
    %v693 = vld [vmem:[#allocation2 + $0x48] sm:$0xf]
    %v694 = vld [vmem:[#allocation2 + $0x4c] sm:$0xf]
    %v695 = vld [vmem:[#allocation2 + $0x50] sm:$0xf]
    %v696 = vld [vmem:[#allocation2 + $0x54] sm:$0xf]
    %v697 = vld [vmem:[#allocation2 + $0x58] sm:$0xf]
    %v698 = vld [vmem:[#allocation2 + $0x5c] sm:$0xf]
    %v699 = vld [vmem:[#allocation2 + $0x60] sm:$0xf]
    %v700 = vld [vmem:[#allocation2 + $0x64] sm:$0xf]
    %v701 = vld [vmem:[#allocation2 + $0x68] sm:$0xf]
    %v702 = vld [vmem:[#allocation2 + $0x6c] sm:$0xf]
    %v703 = vld [vmem:[#allocation2 + $0x70] sm:$0xf]
    %v704 = vld [vmem:[#allocation2 + $0x74] sm:$0xf]
    %v705 = vld [vmem:[#allocation2 + $0x78] sm:$0xf]
    %v706 = vld [vmem:[#allocation2 + $0x7c] sm:$0xf]
    %v707 = vld [vmem:[%s5] sm:$0xff]
    %v708 = vld [vmem:[%s5 + $0x8] sm:$0xff]
    %v709 = vld [vmem:[%s5 + $0x10] sm:$0xff]
    %v710 = vld [vmem:[%s5 + $0x18] sm:$0xff]
    %v711 = vld [vmem:[%s5 + $0x20] sm:$0xff]
    %v712 = vld [vmem:[%s5 + $0x28] sm:$0xff]
    %v713 = vld [vmem:[%s5 + $0x30] sm:$0xff]
    %v714 = vld [vmem:[%s5 + $0x38] sm:$0xff]
    %v747 = vunpack.c.l.b16 %v675
    %v748 = vunpack.c.l.b16 %v676
    %v749 = vunpack.c.l.b16 %v677
    %v750 = vunpack.c.l.b16 %v678
    %v751 = vunpack.c.l.b16 %v679
    %v752 = vunpack.c.l.b16 %v680
    %v753 = vunpack.c.l.b16 %v681
    %v754 = vunpack.c.l.b16 %v682
    %v755 = vunpack.c.l.b16 %v683
    %v756 = vunpack.c.l.b16 %v684
    %v757 = vunpack.c.l.b16 %v685
    %v758 = vunpack.c.l.b16 %v686
    %v759 = vunpack.c.l.b16 %v687
    %v760 = vunpack.c.l.b16 %v688
    %v761 = vunpack.c.l.b16 %v689
    %v762 = vunpack.c.l.b16 %v690
    %v763 = vunpack.c.l.b16 %v691
    %v764 = vunpack.c.l.b16 %v692
    %v765 = vunpack.c.l.b16 %v693
    %v766 = vunpack.c.l.b16 %v694
    %v767 = vunpack.c.l.b16 %v695
    %v768 = vunpack.c.l.b16 %v696
    %v769 = vunpack.c.l.b16 %v697
    %v770 = vunpack.c.l.b16 %v698
    %v771 = vunpack.c.l.b16 %v699
    %v772 = vunpack.c.l.b16 %v700
    %v773 = vunpack.c.l.b16 %v701
    %v774 = vunpack.c.l.b16 %v702
    %v775 = vunpack.c.l.b16 %v703
    %v776 = vunpack.c.l.b16 %v704
    %v777 = vunpack.c.l.b16 %v705
    %v778 = vunpack.c.l.b16 %v706
    %v779 = vpack.c.b16 %v748, %v747
    %v780 = vpack.c.b16 %v750, %v749
    %v781 = vpack.c.b16 %v752, %v751
    %v782 = vpack.c.b16 %v754, %v753
    %v783 = vpack.c.b16 %v756, %v755
    %v784 = vpack.c.b16 %v758, %v757
    %v785 = vpack.c.b16 %v760, %v759
    %v786 = vpack.c.b16 %v762, %v761
    %v787 = vpack.c.b16 %v764, %v763
    %v788 = vpack.c.b16 %v766, %v765
    %v789 = vpack.c.b16 %v768, %v767
    %v790 = vpack.c.b16 %v770, %v769
    %v791 = vpack.c.b16 %v772, %v771
    %v792 = vpack.c.b16 %v774, %v773
    %v793 = vpack.c.b16 %v776, %v775
    %v794 = vpack.c.b16 %v778, %v777
    %811 = vmatpush.bf16.xpose.msra.mxu0 %v786
    %812 = vmatpush.bf16.xpose.msra.mxu0 %v785
    %813 = vmatpush.bf16.xpose.msra.mxu0 %v784
    %814 = vmatpush.bf16.xpose.msra.mxu0 %v783
    %815 = vmatpush.bf16.xpose.msra.mxu0 %v782
    %816 = vmatpush.bf16.xpose.msra.mxu0 %v781
    %817 = vmatpush.bf16.xpose.msra.mxu0 %v780
    %818 = vmatpush.bf16.xpose.msra.mxu0 %v779
    %819 = vmatmul.bf16.gmra.mxu0 %v425
    %v820 = vpop.f32.mrf.mxu0
    %v821 = vadd.f32 %v707, %v820
    %v822 = vpop.f32.mrf.mxu0
    %v823 = vadd.f32 %v709, %v822
    %824 = vmatmul.bf16.gmra.mxu0 %v426
    %v825 = vpop.f32.mrf.mxu0
    %v826 = vadd.f32 %v711, %v825
    %v827 = vpop.f32.mrf.mxu0
    %v828 = vadd.f32 %v713, %v827
    %829 = vdwg.mxu0
    %830 = vmatpush.bf16.xpose.msra.mxu0 %v794
    %831 = vmatpush.bf16.xpose.msra.mxu0 %v793
    %832 = vmatpush.bf16.xpose.msra.mxu0 %v792
    %833 = vmatpush.bf16.xpose.msra.mxu0 %v791
    %834 = vmatpush.bf16.xpose.msra.mxu0 %v790
    %835 = vmatpush.bf16.xpose.msra.mxu0 %v789
    %836 = vmatpush.bf16.xpose.msra.mxu0 %v788
    %837 = vmatpush.bf16.xpose.msra.mxu0 %v787
    %838 = vmatmul.bf16.gmra.mxu0 %v425
    %v839 = vpop.f32.mrf.mxu0
    %v840 = vadd.f32 %v708, %v839
    %v841 = vpop.f32.mrf.mxu0
    %v842 = vadd.f32 %v710, %v841
    %843 = vmatmul.bf16.gmra.mxu0 %v426
    %v844 = vpop.f32.mrf.mxu0
    %v845 = vadd.f32 %v712, %v844
    %v846 = vpop.f32.mrf.mxu0
    %v847 = vadd.f32 %v714, %v846
    %848 = vdwg.mxu0
    %v849 = vmax.f32 %v821, %v840
    %850 = vmax.xlane.f32.xlu0 %v849
    %v851 = vpop.xlane.xlu0 %850
    %v852 = vmax.f32 %v823, %v842
    %853 = vmax.xlane.f32.xlu0 %v852
    %v854 = vpop.xlane.xlu0 %853
    %v855 = vmax.f32 %v826, %v845
    %856 = vmax.xlane.f32.xlu0 %v855
    %v857 = vpop.xlane.xlu0 %856
    %v858 = vmax.f32 %v828, %v847
    %859 = vmax.xlane.f32.xlu0 %v858
    %v860 = vpop.xlane.xlu0 %859
    %v861 = vsub.f32 %v821, %v851
    %v862 = vsub.f32 %v840, %v851
    %v863 = vsub.f32 %v823, %v854
    %v864 = vsub.f32 %v842, %v854
    %v865 = vsub.f32 %v826, %v857
    %v866 = vsub.f32 %v845, %v857
    %v867 = vsub.f32 %v828, %v860
    %v868 = vsub.f32 %v847, %v860
    %v869 = vmul.f32 %v861, 1.442695
    %v870 = vpow.pop %v869
    %v871 = vmul.f32 %v862, 1.442695
    %v872 = vpow.pop %v871
    %v873 = vmul.f32 %v863, 1.442695
    %v874 = vpow.pop %v873
    %v875 = vmul.f32 %v864, 1.442695
    %v876 = vpow.pop %v875
    %v877 = vmul.f32 %v865, 1.442695
    %v878 = vpow.pop %v877
    %v879 = vmul.f32 %v866, 1.442695
    %v880 = vpow.pop %v879
    %v881 = vmul.f32 %v867, 1.442695
    %v882 = vpow.pop %v881
    %v883 = vmul.f32 %v868, 1.442695
    %v884 = vpow.pop %v883
    %v885 = vpack.c.bf16 %v874, %v870
    %v886 = vpack.c.bf16 %v876, %v872
    %v887 = vpack.c.bf16 %v882, %v878
    %v888 = vpack.c.bf16 %v884, %v880
    %v889 = vld [vmem:[#allocation3] sm:$0xf]
    %v890 = vld [vmem:[#allocation3 + $0x4] sm:$0xf]
    %v891 = vld [vmem:[#allocation3 + $0x8] sm:$0xf]
    %v892 = vld [vmem:[#allocation3 + $0xc] sm:$0xf]
    %v893 = vld [vmem:[#allocation3 + $0x10] sm:$0xf]
    %v894 = vld [vmem:[#allocation3 + $0x14] sm:$0xf]
    %v895 = vld [vmem:[#allocation3 + $0x18] sm:$0xf]
    %v896 = vld [vmem:[#allocation3 + $0x1c] sm:$0xf]
    %v897 = vld [vmem:[#allocation3 + $0x20] sm:$0xf]
    %v898 = vld [vmem:[#allocation3 + $0x24] sm:$0xf]
    %v899 = vld [vmem:[#allocation3 + $0x28] sm:$0xf]
    %v900 = vld [vmem:[#allocation3 + $0x2c] sm:$0xf]
    %v901 = vld [vmem:[#allocation3 + $0x30] sm:$0xf]
    %v902 = vld [vmem:[#allocation3 + $0x34] sm:$0xf]
    %v903 = vld [vmem:[#allocation3 + $0x38] sm:$0xf]
    %v904 = vld [vmem:[#allocation3 + $0x3c] sm:$0xf]
    %v905 = vld [vmem:[#allocation3 + $0x40] sm:$0xf]
    %v906 = vld [vmem:[#allocation3 + $0x44] sm:$0xf]
    %v907 = vld [vmem:[#allocation3 + $0x48] sm:$0xf]
    %v908 = vld [vmem:[#allocation3 + $0x4c] sm:$0xf]
    %v909 = vld [vmem:[#allocation3 + $0x50] sm:$0xf]
    %v910 = vld [vmem:[#allocation3 + $0x54] sm:$0xf]
    %v911 = vld [vmem:[#allocation3 + $0x58] sm:$0xf]
    %v912 = vld [vmem:[#allocation3 + $0x5c] sm:$0xf]
    %v913 = vld [vmem:[#allocation3 + $0x60] sm:$0xf]
    %v914 = vld [vmem:[#allocation3 + $0x64] sm:$0xf]
    %v915 = vld [vmem:[#allocation3 + $0x68] sm:$0xf]
    %v916 = vld [vmem:[#allocation3 + $0x6c] sm:$0xf]
    %v917 = vld [vmem:[#allocation3 + $0x70] sm:$0xf]
    %v918 = vld [vmem:[#allocation3 + $0x74] sm:$0xf]
    %v919 = vld [vmem:[#allocation3 + $0x78] sm:$0xf]
    %v920 = vld [vmem:[#allocation3 + $0x7c] sm:$0xf]
    %v953 = vunpack.c.l.b16 %v889
    %v954 = vunpack.c.l.b16 %v890
    %v955 = vunpack.c.l.b16 %v891
    %v956 = vunpack.c.l.b16 %v892
    %v957 = vunpack.c.l.b16 %v893
    %v958 = vunpack.c.l.b16 %v894
    %v959 = vunpack.c.l.b16 %v895
    %v960 = vunpack.c.l.b16 %v896
    %v961 = vunpack.c.l.b16 %v897
    %v962 = vunpack.c.l.b16 %v898
    %v963 = vunpack.c.l.b16 %v899
    %v964 = vunpack.c.l.b16 %v900
    %v965 = vunpack.c.l.b16 %v901
    %v966 = vunpack.c.l.b16 %v902
    %v967 = vunpack.c.l.b16 %v903
    %v968 = vunpack.c.l.b16 %v904
    %v969 = vunpack.c.l.b16 %v905
    %v970 = vunpack.c.l.b16 %v906
    %v971 = vunpack.c.l.b16 %v907
    %v972 = vunpack.c.l.b16 %v908
    %v973 = vunpack.c.l.b16 %v909
    %v974 = vunpack.c.l.b16 %v910
    %v975 = vunpack.c.l.b16 %v911
    %v976 = vunpack.c.l.b16 %v912
    %v977 = vunpack.c.l.b16 %v913
    %v978 = vunpack.c.l.b16 %v914
    %v979 = vunpack.c.l.b16 %v915
    %v980 = vunpack.c.l.b16 %v916
    %v981 = vunpack.c.l.b16 %v917
    %v982 = vunpack.c.l.b16 %v918
    %v983 = vunpack.c.l.b16 %v919
    %v984 = vunpack.c.l.b16 %v920
    %v985 = vpack.c.b16 %v954, %v953
    %v986 = vpack.c.b16 %v956, %v955
    %v987 = vpack.c.b16 %v958, %v957
    %v988 = vpack.c.b16 %v960, %v959
    %v989 = vpack.c.b16 %v962, %v961
    %v990 = vpack.c.b16 %v964, %v963
    %v991 = vpack.c.b16 %v966, %v965
    %v992 = vpack.c.b16 %v968, %v967
    %v993 = vpack.c.b16 %v970, %v969
    %v994 = vpack.c.b16 %v972, %v971
    %v995 = vpack.c.b16 %v974, %v973
    %v996 = vpack.c.b16 %v976, %v975
    %v997 = vpack.c.b16 %v978, %v977
    %v998 = vpack.c.b16 %v980, %v979
    %v999 = vpack.c.b16 %v982, %v981
    %v1000 = vpack.c.b16 %v984, %v983
    %1017 = vmatpush.bf16.msra.mxu0 %v992
    %1018 = vmatpush.bf16.msra.mxu0 %v991
    %1019 = vmatpush.bf16.msra.mxu0 %v990
    %1020 = vmatpush.bf16.msra.mxu0 %v989
    %1021 = vmatpush.bf16.msra.mxu0 %v988
    %1022 = vmatpush.bf16.msra.mxu0 %v987
    %1023 = vmatpush.bf16.msra.mxu0 %v986
    %1024 = vmatpush.bf16.msra.mxu0 %v985
    %1025 = vmatmul.bf16.gmra.mxu0 %v885
    %v1026 = vpop.f32.mrf.mxu0
    %v1027 = vadd.f32 0.0, %v1026
    %v1028 = vpop.f32.mrf.mxu0
    %v1029 = vadd.f32 0.0, %v1028
    %1030 = vmatmul.bf16.gmra.mxu0 %v887
    %v1031 = vpop.f32.mrf.mxu0
    %v1032 = vadd.f32 0.0, %v1031
    %v1033 = vpop.f32.mrf.mxu0
    %v1034 = vadd.f32 0.0, %v1033
    %1035 = vdwg.mxu0
    %1036 = vmatpush.bf16.msra.mxu0 %v1000
    %1037 = vmatpush.bf16.msra.mxu0 %v999
    %1038 = vmatpush.bf16.msra.mxu0 %v998
    %1039 = vmatpush.bf16.msra.mxu0 %v997
    %1040 = vmatpush.bf16.msra.mxu0 %v996
    %1041 = vmatpush.bf16.msra.mxu0 %v995
    %1042 = vmatpush.bf16.msra.mxu0 %v994
    %1043 = vmatpush.bf16.msra.mxu0 %v993
    %1044 = vmatmul.bf16.gmra.mxu0 %v886
    %v1045 = vpop.f32.mrf.mxu0
    %v1046 = vadd.f32 %v1027, %v1045
    %v1047 = vpop.f32.mrf.mxu0
    %v1048 = vadd.f32 %v1029, %v1047
    %1049 = vmatmul.bf16.gmra.mxu0 %v888
    %v1050 = vpop.f32.mrf.mxu0
    %v1051 = vadd.f32 %v1032, %v1050
    %v1052 = vpop.f32.mrf.mxu0
    %v1053 = vadd.f32 %v1034, %v1052
    %1054 = vdwg.mxu0
    %v1055 = vld [vmem:[%s6] sm:$0xf]
    %v1056 = vld [vmem:[%s6 + $0x4] sm:$0xf]
    %v1057 = vld [vmem:[%s6 + $0x8] sm:$0xf]
    %v1058 = vld [vmem:[%s6 + $0xc] sm:$0xf]
    %v1059 = vld [vmem:[%s6 + $0x10] sm:$0xf]
    %v1060 = vld [vmem:[%s6 + $0x14] sm:$0xf]
    %v1061 = vld [vmem:[%s6 + $0x18] sm:$0xf]
    %v1062 = vld [vmem:[%s6 + $0x1c] sm:$0xf]
    %v1063 = vld [vmem:[%s6 + $0x20] sm:$0xf]
    %v1064 = vld [vmem:[%s6 + $0x24] sm:$0xf]
    %v1065 = vld [vmem:[%s6 + $0x28] sm:$0xf]
    %v1066 = vld [vmem:[%s6 + $0x2c] sm:$0xf]
    %v1067 = vld [vmem:[%s6 + $0x30] sm:$0xf]
    %v1068 = vld [vmem:[%s6 + $0x34] sm:$0xf]
    %v1069 = vld [vmem:[%s6 + $0x38] sm:$0xf]
    %v1070 = vld [vmem:[%s6 + $0x3c] sm:$0xf]
    %v1071 = vld [vmem:[%s6 + $0x40] sm:$0xf]
    %v1072 = vld [vmem:[%s6 + $0x44] sm:$0xf]
    %v1073 = vld [vmem:[%s6 + $0x48] sm:$0xf]
    %v1074 = vld [vmem:[%s6 + $0x4c] sm:$0xf]
    %v1075 = vld [vmem:[%s6 + $0x50] sm:$0xf]
    %v1076 = vld [vmem:[%s6 + $0x54] sm:$0xf]
    %v1077 = vld [vmem:[%s6 + $0x58] sm:$0xf]
    %v1078 = vld [vmem:[%s6 + $0x5c] sm:$0xf]
    %v1079 = vld [vmem:[%s6 + $0x60] sm:$0xf]
    %v1080 = vld [vmem:[%s6 + $0x64] sm:$0xf]
    %v1081 = vld [vmem:[%s6 + $0x68] sm:$0xf]
    %v1082 = vld [vmem:[%s6 + $0x6c] sm:$0xf]
    %v1083 = vld [vmem:[%s6 + $0x70] sm:$0xf]
    %v1084 = vld [vmem:[%s6 + $0x74] sm:$0xf]
    %v1085 = vld [vmem:[%s6 + $0x78] sm:$0xf]
    %v1086 = vld [vmem:[%s6 + $0x7c] sm:$0xf]
    %v1119 = vunpack.c.l.b16 %v1055
    %v1120 = vunpack.c.l.b16 %v1056
    %v1121 = vunpack.c.l.b16 %v1057
    %v1122 = vunpack.c.l.b16 %v1058
    %v1123 = vunpack.c.l.b16 %v1059
    %v1124 = vunpack.c.l.b16 %v1060
    %v1125 = vunpack.c.l.b16 %v1061
    %v1126 = vunpack.c.l.b16 %v1062
    %v1127 = vunpack.c.l.b16 %v1063
    %v1128 = vunpack.c.l.b16 %v1064
    %v1129 = vunpack.c.l.b16 %v1065
    %v1130 = vunpack.c.l.b16 %v1066
    %v1131 = vunpack.c.l.b16 %v1067
    %v1132 = vunpack.c.l.b16 %v1068
    %v1133 = vunpack.c.l.b16 %v1069
    %v1134 = vunpack.c.l.b16 %v1070
    %v1135 = vunpack.c.l.b16 %v1071
    %v1136 = vunpack.c.l.b16 %v1072
    %v1137 = vunpack.c.l.b16 %v1073
    %v1138 = vunpack.c.l.b16 %v1074
    %v1139 = vunpack.c.l.b16 %v1075
    %v1140 = vunpack.c.l.b16 %v1076
    %v1141 = vunpack.c.l.b16 %v1077
    %v1142 = vunpack.c.l.b16 %v1078
    %v1143 = vunpack.c.l.b16 %v1079
    %v1144 = vunpack.c.l.b16 %v1080
    %v1145 = vunpack.c.l.b16 %v1081
    %v1146 = vunpack.c.l.b16 %v1082
    %v1147 = vunpack.c.l.b16 %v1083
    %v1148 = vunpack.c.l.b16 %v1084
    %v1149 = vunpack.c.l.b16 %v1085
    %v1150 = vunpack.c.l.b16 %v1086
    %v1151 = vpack.c.b16 %v1120, %v1119
    %v1152 = vpack.c.b16 %v1122, %v1121
    %v1153 = vpack.c.b16 %v1124, %v1123
    %v1154 = vpack.c.b16 %v1126, %v1125
    %v1155 = vpack.c.b16 %v1128, %v1127
    %v1156 = vpack.c.b16 %v1130, %v1129
    %v1157 = vpack.c.b16 %v1132, %v1131
    %v1158 = vpack.c.b16 %v1134, %v1133
    %v1159 = vpack.c.b16 %v1136, %v1135
    %v1160 = vpack.c.b16 %v1138, %v1137
    %v1161 = vpack.c.b16 %v1140, %v1139
    %v1162 = vpack.c.b16 %v1142, %v1141
    %v1163 = vpack.c.b16 %v1144, %v1143
    %v1164 = vpack.c.b16 %v1146, %v1145
    %v1165 = vpack.c.b16 %v1148, %v1147
    %v1166 = vpack.c.b16 %v1150, %v1149
    %1183 = vmatpush.bf16.msra.mxu0 %v1158
    %1184 = vmatpush.bf16.msra.mxu0 %v1157
    %1185 = vmatpush.bf16.msra.mxu0 %v1156
    %1186 = vmatpush.bf16.msra.mxu0 %v1155
    %1187 = vmatpush.bf16.msra.mxu0 %v1154
    %1188 = vmatpush.bf16.msra.mxu0 %v1153
    %1189 = vmatpush.bf16.msra.mxu0 %v1152
    %1190 = vmatpush.bf16.msra.mxu0 %v1151
    %1191 = vmatmul.bf16.gmra.mxu0 %v885
    %v1192 = vpop.f32.mrf.mxu0
    %v1193 = vadd.f32 0.0, %v1192
    %v1194 = vpop.f32.mrf.mxu0
    %v1195 = vadd.f32 0.0, %v1194
    %1196 = vmatmul.bf16.gmra.mxu0 %v887
    %v1197 = vpop.f32.mrf.mxu0
    %v1198 = vadd.f32 0.0, %v1197
    %v1199 = vpop.f32.mrf.mxu0
    %v1200 = vadd.f32 0.0, %v1199
    %1201 = vdwg.mxu0
    %1202 = vmatpush.bf16.msra.mxu0 %v1166
    %1203 = vmatpush.bf16.msra.mxu0 %v1165
    %1204 = vmatpush.bf16.msra.mxu0 %v1164
    %1205 = vmatpush.bf16.msra.mxu0 %v1163
    %1206 = vmatpush.bf16.msra.mxu0 %v1162
    %1207 = vmatpush.bf16.msra.mxu0 %v1161
    %1208 = vmatpush.bf16.msra.mxu0 %v1160
    %1209 = vmatpush.bf16.msra.mxu0 %v1159
    %1210 = vmatmul.bf16.gmra.mxu0 %v886
    %v1211 = vpop.f32.mrf.mxu0
    %v1212 = vadd.f32 %v1193, %v1211
    %v1213 = vpop.f32.mrf.mxu0
    %v1214 = vadd.f32 %v1195, %v1213
    %1215 = vmatmul.bf16.gmra.mxu0 %v888
    %v1216 = vpop.f32.mrf.mxu0
    %v1217 = vadd.f32 %v1198, %v1216
    %v1218 = vpop.f32.mrf.mxu0
    %v1219 = vadd.f32 %v1200, %v1218
    %1220 = vdwg.mxu0
    %v1221 = vrcp.pop %v1212
    %v1222 = vrcp.pop %v1214
    %v1223 = vrcp.pop %v1217
    %v1224 = vrcp.pop %v1219
    %v1225 = vmul.f32 %v1046, %v1221
    %v1226 = vmul.f32 %v1048, %v1222
    %v1227 = vmul.f32 %v1051, %v1223
    %v1228 = vmul.f32 %v1053, %v1224
    %v1229 = vpack.c.bf16 %v1226, %v1225
    %v1230 = vpack.c.bf16 %v1228, %v1227
    %v1231 = vld [vmem:[%s2] sm:$0xf]
    %v1232 = vld [vmem:[%s2 + $0x4] sm:$0xf]
    %v1233 = vld [vmem:[%s2 + $0x8] sm:$0xf]
    %v1234 = vld [vmem:[%s2 + $0xc] sm:$0xf]
    %v1235 = vld [vmem:[%s2 + $0x10] sm:$0xf]
    %v1236 = vld [vmem:[%s2 + $0x14] sm:$0xf]
    %v1237 = vld [vmem:[%s2 + $0x18] sm:$0xf]
    %v1238 = vld [vmem:[%s2 + $0x1c] sm:$0xf]
    %v1239 = vld [vmem:[%s2 + $0x20] sm:$0xf]
    %v1240 = vld [vmem:[%s2 + $0x24] sm:$0xf]
    %v1241 = vld [vmem:[%s2 + $0x28] sm:$0xf]
    %v1242 = vld [vmem:[%s2 + $0x2c] sm:$0xf]
    %v1243 = vld [vmem:[%s2 + $0x30] sm:$0xf]
    %v1244 = vld [vmem:[%s2 + $0x34] sm:$0xf]
    %v1245 = vld [vmem:[%s2 + $0x38] sm:$0xf]
    %v1246 = vld [vmem:[%s2 + $0x3c] sm:$0xf]
    %v1263 = vunpack.c.l.b16 %v1231
    %v1264 = vunpack.c.l.b16 %v1232
    %v1265 = vunpack.c.l.b16 %v1233
    %v1266 = vunpack.c.l.b16 %v1234
    %v1267 = vunpack.c.l.b16 %v1235
    %v1268 = vunpack.c.l.b16 %v1236
    %v1269 = vunpack.c.l.b16 %v1237
    %v1270 = vunpack.c.l.b16 %v1238
    %v1271 = vunpack.c.l.b16 %v1239
    %v1272 = vunpack.c.l.b16 %v1240
    %v1273 = vunpack.c.l.b16 %v1241
    %v1274 = vunpack.c.l.b16 %v1242
    %v1275 = vunpack.c.l.b16 %v1243
    %v1276 = vunpack.c.l.b16 %v1244
    %v1277 = vunpack.c.l.b16 %v1245
    %v1278 = vunpack.c.l.b16 %v1246
    %v1279 = vpack.c.b16 %v1264, %v1263
    %v1280 = vpack.c.b16 %v1266, %v1265
    %v1281 = vpack.c.b16 %v1268, %v1267
    %v1282 = vpack.c.b16 %v1270, %v1269
    %v1283 = vpack.c.b16 %v1272, %v1271
    %v1284 = vpack.c.b16 %v1274, %v1273
    %v1285 = vpack.c.b16 %v1276, %v1275
    %v1286 = vpack.c.b16 %v1278, %v1277
    %1295 = vmatpush.bf16.msra.mxu0 %v1286
    %1296 = vmatpush.bf16.msra.mxu0 %v1285
    %1297 = vmatpush.bf16.msra.mxu0 %v1284
    %1298 = vmatpush.bf16.msra.mxu0 %v1283
    %1299 = vmatpush.bf16.msra.mxu0 %v1282
    %1300 = vmatpush.bf16.msra.mxu0 %v1281
    %1301 = vmatpush.bf16.msra.mxu0 %v1280
    %1302 = vmatpush.bf16.msra.mxu0 %v1279
    %1303 = vmatmul.bf16.gmra.mxu0 %v1229
    %v1304 = vpop.f32.mrf.mxu0
    %v1305 = vadd.f32 0.0, %v1304
    %v1306 = vpop.f32.mrf.mxu0
    %v1307 = vadd.f32 0.0, %v1306
    %1308 = vmatmul.bf16.gmra.mxu0 %v1230
    %v1309 = vpop.f32.mrf.mxu0
    %v1310 = vadd.f32 0.0, %v1309
    %v1311 = vpop.f32.mrf.mxu0
    %v1312 = vadd.f32 0.0, %v1311
    %1313 = vdwg.mxu0
    %v1314 = vpack.c.bf16 %v1305, %v1305
    %v1315 = vpack.c.bf16 %v1307, %v1307
    %v1316 = vpack.c.bf16 %v1310, %v1310
    %v1317 = vpack.c.bf16 %v1312, %v1312
    %1318 = vst [vmem:[#allocation4] sm:$0xf] %v1314
    %1319 = vst [vmem:[#allocation4 + $0x4] sm:$0xf] %v1315
    %1320 = vst [vmem:[#allocation4 + $0x8] sm:$0xf] %v1316
    %1321 = vst [vmem:[#allocation4 + $0xc] sm:$0xf] %v1317
    // Predicated region
    $region30: #{tpu_custom_call.1} parent=1 // pred_check
      _
    $region31: #{tpu_custom_call.1} parent=1 // pred_check_branch
      %1323 = sbr.rel (0) target = $region33
    $region32: #{tpu_custom_call.1} parent=1 // pred_region
      %1325 = vsyncadd [#allocation5], 0
      %s1326 = sshll.u32 [#allocation4], 4
      %s1327 = int_to_ptr.vmem [resolvable:$true] %s1326
      %s1328 = sshll.u32 %s7, 4
      %s1329 = int_to_ptr.hbm [resolvable:$true] %s1328
      %1334 = dma.vmem_to_hbm [thread:$0]  %s1327, 256, %s1329, [#allocation5], 64, 64, 4
    $region33: #{tpu_custom_call.1} parent=1 // pred_fallthru
      _
    // Predicated region
    $region34: #{tpu_custom_call.1} parent=1 // pred_check
      _
    $region35: #{tpu_custom_call.1} parent=1 // pred_check_branch
      %1336 = sbr.rel (0) target = $region37
    $region36: #{tpu_custom_call.1} parent=1 // pred_region
      %1338 = dma.done [#allocation5], 256
    $region37: #{tpu_custom_call.1} parent=1 // pred_fallthru
      _
    %1339 = vsyncpa [#allocation5], 1

</llo_original>
